<compile_context>
chip_gen: v6e
topology: v6e:2x2x1
jax: 0.10.0
libtpu: 0.0.40
codegen_flags: <defaults>
</compile_context>

<pallas_src>
import numpy as np
import jax
import jax.numpy as jnp
from jax.experimental import pallas as pl
from jax.experimental.pallas import tpu as pltpu

LANES = 128  # batch block size == vreg lane width; multiple of 128 on all TPU gens


def _slab_rows(M):
    # Bands (all 8-row aligned for M % 8 == 0):
    #   [0      , M   ) : l2.weight (out,in), lanes 0:M
    #   [M      , 2M  ) : l3.weight (out,in), lanes 0:M
    #   [2M     , 3M  ) : l1.weight[:,0]  broadcast across all 128 lanes
    #   [3M     , 4M  ) : l1.bias         broadcast
    #   [4M     , 5M  ) : l2.bias         broadcast
    #   [5M     , 6M  ) : l3.bias         broadcast
    #   [6M     , 7M  ) : l4.weight[0,:]  broadcast
    #   [7M     , 7M+8) : l4.bias scalar  broadcast (row 7M used, band padded to 8)
    return 7 * M + 8


def pack_params(l1w, l1b, l2w, l2b, l3w, l3b, l4w, l4b, M=16):
    """Pack PyTorch-layout params into one lane-dense (7M+8, 128) f32 slab (single DMA)."""
    assert M % 8 == 0 and M <= LANES, "packing assumes M is a multiple of 8 and M <= 128"
    rows = _slab_rows(M)
    slab = jnp.zeros((rows, LANES), jnp.float32)
    slab = slab.at[0:M, 0:M].set(l2w.astype(jnp.float32))
    slab = slab.at[M:2 * M, 0:M].set(l3w.astype(jnp.float32))

    def bcast(v):  # (M,) -> (M, LANES), value replicated across lanes
        return jnp.broadcast_to(jnp.asarray(v, jnp.float32).reshape(M, 1), (M, LANES))

    slab = slab.at[2 * M:3 * M, :].set(bcast(l1w[:, 0]))
    slab = slab.at[3 * M:4 * M, :].set(bcast(l1b))
    slab = slab.at[4 * M:5 * M, :].set(bcast(l2b))
    slab = slab.at[5 * M:6 * M, :].set(bcast(l3b))
    slab = slab.at[6 * M:7 * M, :].set(bcast(l4w[0, :]))
    slab = slab.at[7 * M, :].set(jnp.full((LANES,), jnp.asarray(l4b, jnp.float32)[0]))
    return slab


def _tan(z):
    # tan via sin * reciprocal(cos): approx reciprocal runs on the EUP (free-ish slot),
    # two Newton-Raphson steps on the VPU recover full f32 accuracy.
    c = jnp.cos(z)
    r = pl.reciprocal(c, approx=True)
    r = r * (2.0 - c * r)
    r = r * (2.0 - c * r)
    return jnp.sin(z) * r


def _make_kernel(M):
    R_W2, R_W3 = 0, M
    R_W1, R_B1, R_B2, R_B3, R_W4, R_B4 = 2 * M, 3 * M, 4 * M, 5 * M, 6 * M, 7 * M

    def kernel(x_ref, slab_ref, o_ref):
        x = x_ref[...]                                  # (1, LANES): batch block of inputs

        # Static, 8-row-aligned slices of the resident parameter slab.
        w2 = slab_ref[R_W2:R_W2 + M, 0:M]               # (M, M)  l2.weight (out,in)
        w3 = slab_ref[R_W3:R_W3 + M, 0:M]               # (M, M)  l3.weight (out,in)
        w1 = slab_ref[R_W1:R_W1 + M, :]                 # (M, LANES) pre-broadcast vectors
        b1 = slab_ref[R_B1:R_B1 + M, :]
        b2 = slab_ref[R_B2:R_B2 + M, :]
        b3 = slab_ref[R_B3:R_B3 + M, :]
        w4 = slab_ref[R_W4:R_W4 + M, :]
        b4 = slab_ref[R_B4:R_B4 + 1, :]                 # (1, LANES)

        # Layer 1: Linear(1, M) -> (M, LANES) outer-product broadcast (VPU only).
        h1 = _tan(w1 * x + b1)
        # Layers 2/3: Linear(M, M) on the MXU, batch streams through the lanes.
        h2 = _tan(jnp.dot(w2, h1, preferred_element_type=jnp.float32) + b2)
        h3 = _tan(jnp.dot(w3, h2, preferred_element_type=jnp.float32) + b3)
        # Layer 4: Linear(M, 1) -> sublane reduce (XLU); no 1-row MXU matmul.
        z4 = jnp.sum(w4 * h3, axis=0, keepdims=True) + b4           # (1, LANES)
        o_ref[...] = _tan(z4)

    return kernel


def make_curvefit_forward(M=16):
    """Builds the kernel once; returns (forward_scalar, forward_batched), both jitted."""
    kernel = _make_kernel(M)
    rows = _slab_rows(M)

    def pallas_forward(x2d, slab):
        # x2d: (1, Bp) f32, Bp % LANES == 0.  Returns (1, Bp).
        n_blk = x2d.shape[1] // LANES
        return pl.pallas_call(
            kernel,
            out_shape=jax.ShapeDtypeStruct((1, x2d.shape[1]), jnp.float32),
            grid=(n_blk,),
            in_specs=[
                pl.BlockSpec((1, LANES), lambda i: (0, i)),      # batch block of x
                pl.BlockSpec((rows, LANES), lambda i: (0, 0)),   # slab: resident across grid
            ],
            out_specs=pl.BlockSpec((1, LANES), lambda i: (0, i)),
            compiler_params=pltpu.CompilerParams(
                dimension_semantics=("parallel",)),               # v7x: split batch over 2 TCs
        )(x2d, slab)

    @jax.jit
    def forward_batched(x_batch, slab):
        """x_batch: (B,) scalars -> (B, 1) outputs (one CurveFit.forward per point)."""
        x = jnp.asarray(x_batch, jnp.float32).reshape(-1)
        B = x.shape[0]
        Bp = ((B + LANES - 1) // LANES) * LANES
        xp = jnp.zeros((1, Bp), jnp.float32).at[0, :B].set(x)
        out = pallas_forward(xp, slab)                            # (1, Bp)
        return out[0, :B].reshape(B, 1)

    @jax.jit
    def forward_scalar(x_scalar, slab):
        """Matches CurveFit.forward(x): scalar in -> (1, 1) out (uses one lane block)."""
        x = jnp.asarray(x_scalar, jnp.float32).reshape(())
        xp = jnp.zeros((1, LANES), jnp.float32).at[0, 0].set(x)
        out = pallas_forward(xp, slab)
        return out[0, 0:1].reshape(1, 1)

    return forward_scalar, forward_batched


def make_pt_params(M=16, key=None, scale=1.0):
    """PyTorch-style layouts: weight (out, in), bias (out,). `scale` shrinks the uniform
    init bound (demo uses 0.25 so every pre-activation stays well inside (-pi/2, pi/2);
    tan's asymptotes would otherwise make any bit-level comparison meaningless)."""
    if key is None:
        key = jax.random.PRNGKey(0)
    ks = jax.random.split(key, 8)

    def lin(kw, kb, fan_in, fan_out):
        bound = scale / np.sqrt(fan_in)
        w = jax.random.uniform(kw, (fan_out, fan_in), jnp.float32, -bound, bound)
        b = jax.random.uniform(kb, (fan_out,), jnp.float32, -bound, bound)
        return w, b

    l1w, l1b = lin(ks[0], ks[1], 1, M)
    l2w, l2b = lin(ks[2], ks[3], M, M)
    l3w, l3b = lin(ks[4], ks[5], M, M)
    l4w, l4b = lin(ks[6], ks[7], M, 1)
    return (l1w, l1b, l2w, l2b, l3w, l3b, l4w, l4b)


def curvefit_ref(x, pt_params):
    """Pure-JAX reference matching the PyTorch forward exactly (PyTorch weight layouts)."""
    l1w, l1b, l2w, l2b, l3w, l3b, l4w, l4b = pt_params
    xb = jnp.asarray(x, jnp.float32).reshape(-1, 1)     # (B, 1)
    o = jnp.tan(xb @ l1w.T + l1b)
    o = jnp.tan(o @ l2w.T + l2b)
    o = jnp.tan(o @ l3w.T + l3b)
    o = jnp.tan(o @ l4w.T + l4b)
    return o                                            # (B, 1)


if __name__ == "__main__":
    M = 16
    key = jax.random.PRNGKey(0)
    kp, kx = jax.random.split(key)

    pt_params = make_pt_params(M=M, key=kp, scale=0.25)
    slab = pack_params(*pt_params, M=M)                 # one-time host-side packing -> single DMA

    forward_scalar, forward_batched = make_curvefit_forward(M=M)

    # Batched evaluation: 256 points -> 2 grid blocks of 128 lanes, weights VMEM-resident.
    B = 256
    x_batch = jax.random.uniform(kx, (B,), jnp.float32, -1.0, 1.0)
    out_b = jax.block_until_ready(forward_batched(x_batch, slab))
    ref_b = curvefit_ref(x_batch, pt_params)
    assert out_b.shape == (B, 1)
    np.testing.assert_allclose(np.asarray(out_b), np.asarray(ref_b), rtol=1e-5, atol=1e-5)

    # Single scalar evaluation, matching CurveFit.forward(x) -> (1, 1).
    out_s = jax.block_until_ready(forward_scalar(0.37, slab))
    ref_s = curvefit_ref(0.37, pt_params)
    assert out_s.shape == (1, 1)
    np.testing.assert_allclose(np.asarray(out_s), np.asarray(ref_s), rtol=1e-5, atol=1e-5)

    print("KERNEL_OK")
</pallas_src>

<mosaic_0001>
module attributes {stable_mosaic.version = 11 : i64} {
  func.func @kernel(%arg0: i32, %arg1: memref<1x128xf32, #tpu.memory_space<vmem>>, %arg2: memref<120x128xf32, #tpu.memory_space<vmem>>, %arg3: memref<1x128xf32, #tpu.memory_space<vmem>>) attributes {dimension_semantics = [#tpu.dimension_semantics<parallel>], iteration_bounds = array<i64: 2>, scalar_prefetch = 0 : i64, scratch_operands = 0 : i64, tpu.core_type = #tpu.core_type<tc>, window_params = [{transform_indices = @transform_0, window_bounds = array<i64: 1, 128>}, {pipeline_mode = #tpu.pipeline_mode<synchronous>, transform_indices = @transform_1, window_bounds = array<i64: 120, 128>}, {transform_indices = @transform_2, window_bounds = array<i64: 1, 128>}]} {
    %c0 = arith.constant 0 : index
    %c0_0 = arith.constant 0 : index
    %0 = vector.load %arg1[%c0, %c0_0] : memref<1x128xf32, #tpu.memory_space<vmem>>, vector<1x128xf32>
    %c0_1 = arith.constant 0 : index
    %c0_2 = arith.constant 0 : index
    %1 = vector.load %arg2[%c0_1, %c0_2] : memref<120x128xf32, #tpu.memory_space<vmem>>, vector<16x16xf32>
    %c16 = arith.constant 16 : index
    %c0_3 = arith.constant 0 : index
    %2 = vector.load %arg2[%c16, %c0_3] : memref<120x128xf32, #tpu.memory_space<vmem>>, vector<16x16xf32>
    %c32 = arith.constant 32 : index
    %c0_4 = arith.constant 0 : index
    %3 = vector.load %arg2[%c32, %c0_4] : memref<120x128xf32, #tpu.memory_space<vmem>>, vector<16x128xf32>
    %c48 = arith.constant 48 : index
    %c0_5 = arith.constant 0 : index
    %4 = vector.load %arg2[%c48, %c0_5] : memref<120x128xf32, #tpu.memory_space<vmem>>, vector<16x128xf32>
    %c64 = arith.constant 64 : index
    %c0_6 = arith.constant 0 : index
    %5 = vector.load %arg2[%c64, %c0_6] : memref<120x128xf32, #tpu.memory_space<vmem>>, vector<16x128xf32>
    %c80 = arith.constant 80 : index
    %c0_7 = arith.constant 0 : index
    %6 = vector.load %arg2[%c80, %c0_7] : memref<120x128xf32, #tpu.memory_space<vmem>>, vector<16x128xf32>
    %c96 = arith.constant 96 : index
    %c0_8 = arith.constant 0 : index
    %7 = vector.load %arg2[%c96, %c0_8] : memref<120x128xf32, #tpu.memory_space<vmem>>, vector<16x128xf32>
    %c112 = arith.constant 112 : index
    %c0_9 = arith.constant 0 : index
    %8 = vector.load %arg2[%c112, %c0_9] : memref<120x128xf32, #tpu.memory_space<vmem>>, vector<1x128xf32>
    %9 = vector.broadcast %0 : vector<1x128xf32> to vector<16x128xf32>
    %10 = arith.mulf %3, %9 : vector<16x128xf32>
    %11 = arith.addf %10, %4 : vector<16x128xf32>
    %12 = math.cos %11 : vector<16x128xf32>
    %13 = tpu.reciprocal %12 {approx = true} : vector<16x128xf32> -> vector<16x128xf32>
    %14 = arith.mulf %12, %13 : vector<16x128xf32>
    %cst = arith.constant 2.000000e+00 : f32
    %15 = vector.broadcast %cst : f32 to vector<16x128xf32>
    %16 = arith.subf %15, %14 : vector<16x128xf32>
    %17 = arith.mulf %13, %16 : vector<16x128xf32>
    %18 = arith.mulf %12, %17 : vector<16x128xf32>
    %cst_10 = arith.constant 2.000000e+00 : f32
    %19 = vector.broadcast %cst_10 : f32 to vector<16x128xf32>
    %20 = arith.subf %19, %18 : vector<16x128xf32>
    %21 = arith.mulf %17, %20 : vector<16x128xf32>
    %22 = math.sin %11 : vector<16x128xf32>
    %23 = arith.mulf %22, %21 : vector<16x128xf32>
    %cst_11 = arith.constant dense<0.000000e+00> : vector<16x128xf32>
    %24 = tpu.matmul %1, %23, %cst_11 {dimension_numbers = #tpu.dot_dimension_numbers<[1], [0], [0], [1], [0, 0, 1, 1], [], []>} : vector<16x16xf32>, vector<16x128xf32>, vector<16x128xf32> -> vector<16x128xf32>
    %25 = arith.addf %24, %5 : vector<16x128xf32>
    %26 = math.cos %25 : vector<16x128xf32>
    %27 = tpu.reciprocal %26 {approx = true} : vector<16x128xf32> -> vector<16x128xf32>
    %28 = arith.mulf %26, %27 : vector<16x128xf32>
    %cst_12 = arith.constant 2.000000e+00 : f32
    %29 = vector.broadcast %cst_12 : f32 to vector<16x128xf32>
    %30 = arith.subf %29, %28 : vector<16x128xf32>
    %31 = arith.mulf %27, %30 : vector<16x128xf32>
    %32 = arith.mulf %26, %31 : vector<16x128xf32>
    %cst_13 = arith.constant 2.000000e+00 : f32
    %33 = vector.broadcast %cst_13 : f32 to vector<16x128xf32>
    %34 = arith.subf %33, %32 : vector<16x128xf32>
    %35 = arith.mulf %31, %34 : vector<16x128xf32>
    %36 = math.sin %25 : vector<16x128xf32>
    %37 = arith.mulf %36, %35 : vector<16x128xf32>
    %cst_14 = arith.constant dense<0.000000e+00> : vector<16x128xf32>
    %38 = tpu.matmul %2, %37, %cst_14 {dimension_numbers = #tpu.dot_dimension_numbers<[1], [0], [0], [1], [0, 0, 1, 1], [], []>} : vector<16x16xf32>, vector<16x128xf32>, vector<16x128xf32> -> vector<16x128xf32>
    %39 = arith.addf %38, %6 : vector<16x128xf32>
    %40 = math.cos %39 : vector<16x128xf32>
    %41 = tpu.reciprocal %40 {approx = true} : vector<16x128xf32> -> vector<16x128xf32>
    %42 = arith.mulf %40, %41 : vector<16x128xf32>
    %cst_15 = arith.constant 2.000000e+00 : f32
    %43 = vector.broadcast %cst_15 : f32 to vector<16x128xf32>
    %44 = arith.subf %43, %42 : vector<16x128xf32>
    %45 = arith.mulf %41, %44 : vector<16x128xf32>
    %46 = arith.mulf %40, %45 : vector<16x128xf32>
    %cst_16 = arith.constant 2.000000e+00 : f32
    %47 = vector.broadcast %cst_16 : f32 to vector<16x128xf32>
    %48 = arith.subf %47, %46 : vector<16x128xf32>
    %49 = arith.mulf %45, %48 : vector<16x128xf32>
    %50 = math.sin %39 : vector<16x128xf32>
    %51 = arith.mulf %50, %49 : vector<16x128xf32>
    %52 = arith.mulf %7, %51 : vector<16x128xf32>
    %cst_17 = arith.constant dense<0.000000e+00> : vector<128xf32>
    %53 = vector.multi_reduction <add>, %52, %cst_17 [0] : vector<16x128xf32> to vector<128xf32>
    %54 = vector.shape_cast %53 : vector<128xf32> to vector<1x128xf32>
    %55 = arith.addf %54, %8 : vector<1x128xf32>
    %56 = math.cos %55 : vector<1x128xf32>
    %57 = tpu.reciprocal %56 {approx = true} : vector<1x128xf32> -> vector<1x128xf32>
    %58 = arith.mulf %56, %57 : vector<1x128xf32>
    %cst_18 = arith.constant 2.000000e+00 : f32
    %59 = vector.broadcast %cst_18 : f32 to vector<1x128xf32>
    %60 = arith.subf %59, %58 : vector<1x128xf32>
    %61 = arith.mulf %57, %60 : vector<1x128xf32>
    %62 = arith.mulf %56, %61 : vector<1x128xf32>
    %cst_19 = arith.constant 2.000000e+00 : f32
    %63 = vector.broadcast %cst_19 : f32 to vector<1x128xf32>
    %64 = arith.subf %63, %62 : vector<1x128xf32>
    %65 = arith.mulf %61, %64 : vector<1x128xf32>
    %66 = math.sin %55 : vector<1x128xf32>
    %67 = arith.mulf %66, %65 : vector<1x128xf32>
    %c0_20 = arith.constant 0 : index
    %c0_21 = arith.constant 0 : index
    %68 = vector.load %arg3[%c0_20, %c0_21] : memref<1x128xf32, #tpu.memory_space<vmem>>, vector<1x128xf32>
    tpu.vector_store %arg3[%c0_20, %c0_21], %67 {strides = array<i32>} : memref<1x128xf32, #tpu.memory_space<vmem>>, vector<1x128xf32>,
    return
  }
  func.func @transform_0(%arg0: i32) -> (i32, i32) {
    %c0_i32 = arith.constant 0 : i32
    %c0_i32_0 = arith.constant 0 : i32
    return %c0_i32, %arg0 : i32, i32
  }
  func.func @transform_1(%arg0: i32) -> (i32, i32) {
    %c0_i32 = arith.constant 0 : i32
    %c0_i32_0 = arith.constant 0 : i32
    %c0_i32_1 = arith.constant 0 : i32
    return %c0_i32, %c0_i32_0 : i32, i32
  }
  func.func @transform_2(%arg0: i32) -> (i32, i32) {
    %c0_i32 = arith.constant 0 : i32
    %c0_i32_0 = arith.constant 0 : i32
    return %c0_i32, %arg0 : i32, i32
  }
}

</mosaic_0001>

<llo_original>
// kernel: forward_batched.1
$region0: #{forward_batched.1}
  #allocation0 [shape = 'u32[]', space=smem, size = 0x4, offset = 0x4, fixed_abs, tag = 'smem constant byte address 0x4 - core index']
  #allocation1 [shape = 'u32[144,128]{1,0:T(1,128)}', space=vmem, size = 0x12000, scoped, tag = 'internal scratch']
  %s0 = inlined_call_operand.hbm [shape: f32[1,256], index: 0, kind: input, shape index: {}]
  %s1 = inlined_call_operand.hbm [shape: f32[120,128], index: 1, kind: input, shape index: {}]
  %s2 = inlined_call_operand.hbm [shape: f32[1,256], index: 2, kind: output, shape index: {}]
  %s3 = sld [smem:[#allocation0]]
  $region49: #{forward_batched.1} parent=0
    _
  %s5 = ssub.s32 1, %s3
  %s6 = scalar_select 0, %s5, %s3
  $region1: #{forward_batched.1} parent=0
    #allocation2 [shape = 'u8[1024]{0}', space=vmem, size = 0x400, scoped, tag = 'input window, operand 0']
    #allocation3 [shape = 's32[2]{0}', space=sflag, size = 0x8, scoped, tag = 'scoped memory for forward_batched.1']
    #allocation4 [shape = 's32[2]{0}', space=sflag, size = 0x8, scoped, tag = 'scoped memory for forward_batched.1']
    #allocation5 [shape = 'u8[61440]{0}', space=vmem, size = 0xf000, scoped, tag = 'input window, operand 1, single buffered']
    #allocation6 [shape = 's32[1]{0}', space=sflag, size = 0x4, scoped, tag = 'scoped memory for forward_batched.1']
    #allocation7 [shape = 'u8[1024]{0}', space=vmem, size = 0x400, scoped, tag = 'output window, operand 0']
    %7 = vsyncpa [#allocation3], 0
    %s8 = scalar_lea.sflag [#allocation3], 1
    %9 = vsyncpa %s8, 0
    %10 = vsyncpa [#allocation6], 0
    %11 = vsyncpa [#allocation4], 0
    %s12 = scalar_lea.sflag [#allocation4], 1
    %13 = vsyncpa %s12, 0
    loop: start=0, step=1, limit=4
    $region2: #{forward_batched.1} parent=1 // loop_pre_header
      _
    $region3: #{forward_batched.1} parent=1 // loop_header
      %s15 = sphi 0, %s19
      %p16 = scmp.ge.s32.totalorder %s15, 4
      %s25 = sphi 0, %s27
      %s28 = sphi 0, %s25
      %s29 = sphi 0, %s28
      %s45 = sphi 0, %s29
      %s49 = sphi 0, %s49
      %s51 = sphi 0, %s49
      %s52 = sphi 0, %s51
      %s66 = sphi 0, %s52
      %s72 = sphi 0, %s74
      %s75 = sphi 0, %s72
      %s76 = sphi 0, %s75
      %s92 = sphi 0, %s76
    $region4: #{forward_batched.1} parent=1 // loop_header_branch
      %18 = sbr.rel (%p16) target = $region8
    $region5: #{forward_batched.1} parent=1 // loop_body
      %s20 = ssub.s32 %s15, 1
      %s21 = ssub.s32 %s15, 2
      %s22 = sadd.s32 %s15, 1
      %s23 = ssub.s32 %s15, %s22
      %p24 = scmp.eq.s32.totalorder %s23, 0
      %s26 = sadd.s32 %s25, 1
      %s27 = scalar_select %p24, %s25, %s26
      %p30 = pneg %p24
      %p31 = scmp.eq.s32.totalorder %s15, 1
      %p32 = por %p30, %p31
      %p33 = scmp.ne.s32.totalorder %s25, %s28
      %p34 = scmp.eq.s32.totalorder %s15, 0
      %p35 = por %p33, %p34
      %p36 = scmp.ne.s32.totalorder %s25, %s28
      %p37 = scmp.eq.s32.totalorder %s20, 1
      %p38 = por %p36, %p37
      %p39 = scmp.ne.s32.totalorder %s28, %s29
      %p40 = scmp.eq.s32.totalorder %s20, 0
      %p41 = por %p39, %p40
      %p42 = scmp.ne.s32.totalorder %s28, %s29
      %p43 = scmp.eq.s32.totalorder %s21, 1
      %p44 = por %p42, %p43
      %p46 = scmp.ne.s32.totalorder %s29, %s45
      %p47 = scmp.eq.s32.totalorder %s21, 0
      %p48 = por %p46, %p47
      %s50 = sadd.s32 %s49, 1
      %p53 = scmp.eq.s32.totalorder %s15, 1
      %p54 = scmp.ne.s32.totalorder %s49, %s51
      %p55 = scmp.eq.s32.totalorder %s15, 0
      %p56 = por %p54, %p55
      %p57 = scmp.ne.s32.totalorder %s49, %s51
      %p58 = scmp.eq.s32.totalorder %s20, 1
      %p59 = por %p57, %p58
      %p60 = scmp.ne.s32.totalorder %s51, %s52
      %p61 = scmp.eq.s32.totalorder %s20, 0
      %p62 = por %p60, %p61
      %p63 = scmp.ne.s32.totalorder %s51, %s52
      %p64 = scmp.eq.s32.totalorder %s21, 1
      %p65 = por %p63, %p64
      %p67 = scmp.ne.s32.totalorder %s52, %s66
      %p68 = scmp.eq.s32.totalorder %s21, 0
      %p69 = por %p67, %p68
      %s70 = ssub.s32 %s15, %s22
      %p71 = scmp.eq.s32.totalorder %s70, 0
      %s73 = sadd.s32 %s72, 1
      %s74 = scalar_select %p71, %s72, %s73
      %p77 = pneg %p71
      %p78 = scmp.eq.s32.totalorder %s15, 1
      %p79 = por %p77, %p78
      %p80 = scmp.ne.s32.totalorder %s72, %s75
      %p81 = scmp.eq.s32.totalorder %s15, 0
      %p82 = por %p80, %p81
      %p83 = scmp.ne.s32.totalorder %s72, %s75
      %p84 = scmp.eq.s32.totalorder %s20, 1
      %p85 = por %p83, %p84
      %p86 = scmp.ne.s32.totalorder %s75, %s76
      %p87 = scmp.eq.s32.totalorder %s20, 0
      %p88 = por %p86, %p87
      %p89 = scmp.ne.s32.totalorder %s75, %s76
      %p90 = scmp.eq.s32.totalorder %s21, 1
      %p91 = por %p89, %p90
      %p93 = scmp.ne.s32.totalorder %s76, %s92
      %p94 = scmp.eq.s32.totalorder %s21, 0
      %p95 = por %p93, %p94
      %p96 = scmp.le.s32.totalorder 1, %s15
      %p97 = scmp.lt.s32.totalorder %s15, 3
      %p98 = pnand %p96, %p97
      %p99 = pneg %p98
      // Predicated region
      $region9: #{forward_batched.1} parent=5 // pred_check
        _
      $region10: #{forward_batched.1} parent=5 // pred_check_branch
        %101 = sbr.rel (%p98) target = $region12
      $region11: #{forward_batched.1} parent=5 // pred_region
        %s102 = ssub.s32 %s15, 1
        // Predicated region
        $region13: #{forward_batched.1} parent=11 // pred_check
          %p103 = pneg %p62
        $region14: #{forward_batched.1} parent=11 // pred_check_branch
          %105 = sbr.rel (%p103) target = $region16
        $region15: #{forward_batched.1} parent=11 // pred_region
          %s107 = ssub.s32 1920, 1920
          %108 = vsyncadd [#allocation6], %s107
          %s109 = sshll.u32 [#allocation5], 4
          %s110 = int_to_ptr.vmem [resolvable:$true] %s109
          %115 = dma.hbm_to_vmem [thread:$0]  %s1, 1920, %s110, [#allocation6], 128, 128, 8
        $region16: #{forward_batched.1} parent=11 // pred_fallthru
          _
      $region12: #{forward_batched.1} parent=5 // pred_fallthru
        _
      %p116 = scmp.lt.s32.totalorder %s15, 2
      // Predicated region
      $region17: #{forward_batched.1} parent=5 // pred_check
        %p117 = pneg %p116
      $region18: #{forward_batched.1} parent=5 // pred_check_branch
        %119 = sbr.rel (%p117) target = $region20
      $region19: #{forward_batched.1} parent=5 // pred_region
        // Predicated region
        $region21: #{forward_batched.1} parent=19 // pred_check
          %p120 = pneg %p35
        $region22: #{forward_batched.1} parent=19 // pred_check_branch
          %122 = sbr.rel (%p120) target = $region24
        $region23: #{forward_batched.1} parent=19 // pred_region
          %s123 = sand.u32 %s25, 1
          %s124 = scalar_lea.sflag [#allocation3], %s123
          %s125 = sand.u32 %s25, 1
          %s126 = scalar_lea.vmem [#allocation2], %s125
          %s128 = ssub.s32 16, 16
          %129 = vsyncadd %s124, %s128
          %s130 = smul.addr %s15, 16
          %s131 = scalar_lea.hbm %s0, %s130
          %s133 = sshll.u32 %s126, 4
          %s134 = int_to_ptr.vmem [resolvable:$true] %s133
          %136 = dma.hbm_to_vmem [thread:$0]  %s131, 16, %s134, %s124
        $region24: #{forward_batched.1} parent=19 // pred_fallthru
          _
      $region20: #{forward_batched.1} parent=5 // pred_fallthru
        _
      %p137 = scmp.le.s32.totalorder 1, %s15
      %p138 = scmp.lt.s32.totalorder %s15, 3
      %p139 = pnand %p137, %p138
      %p140 = pneg %p139
      // Predicated region
      $region25: #{forward_batched.1} parent=5 // pred_check
        _
      $region26: #{forward_batched.1} parent=5 // pred_check_branch
        %142 = sbr.rel (%p139) target = $region28
      $region27: #{forward_batched.1} parent=5 // pred_region
        %s143 = ssub.s32 %s15, 1
        %s144 = sand.u32 %s28, 1
        %s145 = scalar_lea.sflag [#allocation3], %s144
        %s146 = sand.u32 %s28, 1
        %s147 = scalar_lea.vmem [#allocation2], %s146
        // Predicated region
        $region29: #{forward_batched.1} parent=27 // pred_check
          %p148 = pneg %p41
        $region30: #{forward_batched.1} parent=27 // pred_check_branch
          %150 = sbr.rel (%p148) target = $region32
        $region31: #{forward_batched.1} parent=27 // pred_region
          %151 = dma.done %s145, 16
        $region32: #{forward_batched.1} parent=27 // pred_fallthru
          _
        // Predicated region
        $region33: #{forward_batched.1} parent=27 // pred_check
          %p152 = pneg %p62
        $region34: #{forward_batched.1} parent=27 // pred_check_branch
          %154 = sbr.rel (%p152) target = $region36
        $region35: #{forward_batched.1} parent=27 // pred_region
          %155 = dma.done [#allocation6], 1920
        $region36: #{forward_batched.1} parent=27 // pred_fallthru
          _
        %s156 = sand.u32 %s28, 1
        %s157 = scalar_lea.sflag [#allocation3], %s156
        %s158 = sand.u32 %s28, 1
        %s159 = scalar_lea.vmem [#allocation2], %s158
        %p160 = pneg %p41
        %p161 = pneg %p38
        %p162 = pneg %p62
        %p163 = pneg %p59
        %p164 = pneg %p88
        %p165 = pneg %p85
        %s166 = sand.u32 %s75, 1
        %s167 = scalar_lea.sflag [#allocation4], %s166
        %s168 = sand.u32 %s75, 1
        %s169 = scalar_lea.vmem [#allocation7], %s168
        %v170 = vld [vmem:[%s147] sm:$0x1]
        %v171 = vld [vmem:[#allocation5] sm:$0xff]
        %v172 = vld [vmem:[#allocation5 + $0x8] sm:$0xff]
        %v173 = vld [vmem:[#allocation5 + $0x10] sm:$0xff]
        %v174 = vld [vmem:[#allocation5 + $0x18] sm:$0xff]
        %v175 = vld [vmem:[#allocation5 + $0x20] sm:$0xff]
        %v176 = vld [vmem:[#allocation5 + $0x28] sm:$0xff]
        %v177 = vld [vmem:[#allocation5 + $0x30] sm:$0xff]
        %v178 = vld [vmem:[#allocation5 + $0x38] sm:$0xff]
        %v179 = vld [vmem:[#allocation5 + $0x40] sm:$0xff]
        %v180 = vld [vmem:[#allocation5 + $0x48] sm:$0xff]
        %v181 = vld [vmem:[#allocation5 + $0x50] sm:$0xff]
        %v182 = vld [vmem:[#allocation5 + $0x58] sm:$0xff]
        %v183 = vld [vmem:[#allocation5 + $0x60] sm:$0xff]
        %v184 = vld [vmem:[#allocation5 + $0x68] sm:$0xff]
        %v185 = vld [vmem:[#allocation5 + $0x70] sm:$0x1]
        %v187 = vlaneseq
        %v188 = vshrl.u32 %v187, 7
        %v189 = vsub.s32 0, %v188
        %v190 = vrot.slane %v170, %v189
        %v192 = vmul.f32 %v175, %v190
        %v193 = vmul.f32 %v176, %v190
        %v194 = vadd.f32 %v192, %v177
        %v195 = vadd.f32 %v193, %v178
        %v196 = vand.u32 2147483647, %v194
        %vm197 = vcmp.le.f32.partialorder %v196, 0.7853982
        %vm198 = vcmp.lt.s32.totalorder %v194, 0
        %v199 = vand.u32 %v194, 2139095040
        %v200 = vshrl.u32 %v199, 23
        %v201 = vsub.s32 %v200, 127
        %v202 = vand.u32 2147483647, %v194
        %v203 = vand.u32 %v202, 8388607
        %v204 = vor.u32 %v203, 8388608
        %v205 = vsub.s32 0, %v204
        %v206 = vadd.s32 %v201, 1
        %vm207 = vcmp.gt.s32.totalorder %v206, 0
        %v208 = vsel %vm207, %v206, 0
        %v209 = vshrl.u32 %v208, 5
        %v210 = vand.u32 %v208, 31
        %v211 = vsub.s32 32, %v210
        %v212 = vshrl.u32 683565275, %v211
        %v213 = vshll.u32 683565275, %v210
        %v214 = vshrl.u32 2475754826, %v211
        %v215 = vor.u32 %v213, %v214
        %v216 = vshll.u32 2475754826, %v210
        %v217 = vshrl.u32 2131351028, %v211
        %v218 = vor.u32 %v216, %v217
        %v219 = vshll.u32 2131351028, %v210
        %v220 = vshrl.u32 2102212464, %v211
        %v221 = vor.u32 %v219, %v220
        %v222 = vshll.u32 2102212464, %v210
        %v223 = vshrl.u32 920167782, %v211
        %v224 = vor.u32 %v222, %v223
        %v225 = vshll.u32 920167782, %v210
        %v226 = vshrl.u32 1326507024, %v211
        %v227 = vor.u32 %v225, %v226
        %vm228 = vcmp.lt.s32.totalorder %v209, 1
        %vm229 = vcmp.lt.s32.totalorder %v209, 2
        %vm230 = vcmp.lt.s32.totalorder %v209, 3
        %vm231 = vcmp.lt.s32.totalorder %v209, 4
        %v232 = vsel %vm228, %v212, %v215
        %v233 = vsel %vm231, %v221, 2102212464
        %v234 = vsel %vm230, %v218, %v233
        %v235 = vsel %vm229, %v232, %v234
        %v236 = vsel %vm228, %v215, %v218
        %v237 = vsel %vm231, %v224, 920167782
        %v238 = vsel %vm230, %v221, %v237
        %v239 = vsel %vm229, %v236, %v238
        %v240 = vsel %vm228, %v218, %v221
        %v241 = vsel %vm231, %v227, 1326507024
        %v242 = vsel %vm230, %v224, %v241
        %v243 = vsel %vm229, %v240, %v242
        %v244 = vshll.u32 %v204, 8
        %v245 = vmul.u32.u64.compose %v244, %v243
        %v246 = vextract.low.u32 %v245
        %v247 = vextract.high.u32 %v245
        %v248 = vmul.u32.u64.compose %v244, %v239
        %v249 = vextract.low.u32 %v248
        %v250 = vextract.high.u32 %v248
        %v251 = vmul.u32 %v244, %v235
        %v252 = vadd.s32 %v247, %v249
        %vm253 = vc.u32 %v247, %v249
        %v254 = vadd.s32 %v250, 1
        %v255 = vsel %vm253, %v254, %v250
        %v256 = vadd.s32 %v251, %v255
        %v257 = vadd.s32 %v256, 536870912
        %v258 = vshrl.u32 %v257, 30
        %v259 = vshll.u32 %v258, 30
        %v260 = vsub.s32 %v256, %v259
        %vm261 = vcmp.lt.s32.totalorder %v260, 0
        %v262 = vsub.s32 0, %v260
        %v263 = vsel %vm261, %v262, %v260
        %v264 = vclz %v263
        %v265 = vsub.s32 %v264, 2
        %vm266 = vcmp.gt.s32.totalorder 0, %v265
        %v267 = vsel %vm266, 0, %v265
        %v268 = vsub.s32 32, %v267
        %v269 = vshll.u32 %v260, %v267
        %v270 = vshrl.u32 %v252, %v268
        %v271 = vor.u32 %v269, %v270
        %v272 = vsub.s32 4294967266, %v267
        %v273 = vadd.s32 %v272, 127
        %v274 = vshll.u32 %v273, 23
        %v275 = vor.u32 4788187, %v274
        %v276 = vand.u32 2147483647, %v275
        %v278 = vcvt.s32.f32 %v271
        %v279 = vmul.f32 %v278, %v276
        %v280 = vxor.u32 %v279, 2147483648
        %v281 = vsel %vm198, %v280, %v279
        %v282 = vsub.s32 4, %v258
        %v283 = vsel %vm198, %v282, %v258
        %v284 = vsel %vm197, %v194, %v281
        %v285 = vsel %vm197, 0, %v283
        %v286 = vcosq.f32.pop %v284
        %v287 = vsinq.f32.pop %v284
        %vm288 = vweird.f32 %v194
        %v289 = vand.u32 %v285, 3
        %vm290 = vcmp.lt.s32.totalorder %v289, 2
        %vm291 = vcmp.eq.s32.totalorder %v289, 0
        %v292 = vxor.u32 %v287, 2147483648
        %v293 = vsel %vm291, %v286, %v292
        %vm294 = vcmp.eq.s32.totalorder %v289, 2
        %v295 = vxor.u32 %v286, 2147483648
        %v296 = vsel %vm294, %v295, %v287
        %v297 = vsel %vm290, %v293, %v296
        %v298 = vsel %vm288, nan, %v297
        %v299 = vand.u32 2147483647, %v195
        %vm300 = vcmp.le.f32.partialorder %v299, 0.7853982
        %vm301 = vcmp.lt.s32.totalorder %v195, 0
        %v302 = vand.u32 %v195, 2139095040
        %v303 = vshrl.u32 %v302, 23
        %v304 = vsub.s32 %v303, 127
        %v305 = vand.u32 2147483647, %v195
        %v306 = vand.u32 %v305, 8388607
        %v307 = vor.u32 %v306, 8388608
        %v308 = vsub.s32 0, %v307
        %v309 = vadd.s32 %v304, 1
        %vm310 = vcmp.gt.s32.totalorder %v309, 0
        %v311 = vsel %vm310, %v309, 0
        %v312 = vshrl.u32 %v311, 5
        %v313 = vand.u32 %v311, 31
        %v314 = vsub.s32 32, %v313
        %v315 = vshrl.u32 683565275, %v314
        %v316 = vshll.u32 683565275, %v313
        %v317 = vshrl.u32 2475754826, %v314
        %v318 = vor.u32 %v316, %v317
        %v319 = vshll.u32 2475754826, %v313
        %v320 = vshrl.u32 2131351028, %v314
        %v321 = vor.u32 %v319, %v320
        %v322 = vshll.u32 2131351028, %v313
        %v323 = vshrl.u32 2102212464, %v314
        %v324 = vor.u32 %v322, %v323
        %v325 = vshll.u32 2102212464, %v313
        %v326 = vshrl.u32 920167782, %v314
        %v327 = vor.u32 %v325, %v326
        %v328 = vshll.u32 920167782, %v313
        %v329 = vshrl.u32 1326507024, %v314
        %v330 = vor.u32 %v328, %v329
        %vm331 = vcmp.lt.s32.totalorder %v312, 1
        %vm332 = vcmp.lt.s32.totalorder %v312, 2
        %vm333 = vcmp.lt.s32.totalorder %v312, 3
        %vm334 = vcmp.lt.s32.totalorder %v312, 4
        %v335 = vsel %vm331, %v315, %v318
        %v336 = vsel %vm334, %v324, 2102212464
        %v337 = vsel %vm333, %v321, %v336
        %v338 = vsel %vm332, %v335, %v337
        %v339 = vsel %vm331, %v318, %v321
        %v340 = vsel %vm334, %v327, 920167782
        %v341 = vsel %vm333, %v324, %v340
        %v342 = vsel %vm332, %v339, %v341
        %v343 = vsel %vm331, %v321, %v324
        %v344 = vsel %vm334, %v330, 1326507024
        %v345 = vsel %vm333, %v327, %v344
        %v346 = vsel %vm332, %v343, %v345
        %v347 = vshll.u32 %v307, 8
        %v348 = vmul.u32.u64.compose %v347, %v346
        %v349 = vextract.low.u32 %v348
        %v350 = vextract.high.u32 %v348
        %v351 = vmul.u32.u64.compose %v347, %v342
        %v352 = vextract.low.u32 %v351
        %v353 = vextract.high.u32 %v351
        %v354 = vmul.u32 %v347, %v338
        %v355 = vadd.s32 %v350, %v352
        %vm356 = vc.u32 %v350, %v352
        %v357 = vadd.s32 %v353, 1
        %v358 = vsel %vm356, %v357, %v353
        %v359 = vadd.s32 %v354, %v358
        %v360 = vadd.s32 %v359, 536870912
        %v361 = vshrl.u32 %v360, 30
        %v362 = vshll.u32 %v361, 30
        %v363 = vsub.s32 %v359, %v362
        %vm364 = vcmp.lt.s32.totalorder %v363, 0
        %v365 = vsub.s32 0, %v363
        %v366 = vsel %vm364, %v365, %v363
        %v367 = vclz %v366
        %v368 = vsub.s32 %v367, 2
        %vm369 = vcmp.gt.s32.totalorder 0, %v368
        %v370 = vsel %vm369, 0, %v368
        %v371 = vsub.s32 32, %v370
        %v372 = vshll.u32 %v363, %v370
        %v373 = vshrl.u32 %v355, %v371
        %v374 = vor.u32 %v372, %v373
        %v375 = vsub.s32 4294967266, %v370
        %v376 = vadd.s32 %v375, 127
        %v377 = vshll.u32 %v376, 23
        %v378 = vor.u32 4788187, %v377
        %v379 = vand.u32 2147483647, %v378
        %v381 = vcvt.s32.f32 %v374
        %v382 = vmul.f32 %v381, %v379
        %v383 = vxor.u32 %v382, 2147483648
        %v384 = vsel %vm301, %v383, %v382
        %v385 = vsub.s32 4, %v361
        %v386 = vsel %vm301, %v385, %v361
        %v387 = vsel %vm300, %v195, %v384
        %v388 = vsel %vm300, 0, %v386
        %v389 = vcosq.f32.pop %v387
        %v390 = vsinq.f32.pop %v387
        %vm391 = vweird.f32 %v195
        %v392 = vand.u32 %v388, 3
        %vm393 = vcmp.lt.s32.totalorder %v392, 2
        %vm394 = vcmp.eq.s32.totalorder %v392, 0
        %v395 = vxor.u32 %v390, 2147483648
        %v396 = vsel %vm394, %v389, %v395
        %vm397 = vcmp.eq.s32.totalorder %v392, 2
        %v398 = vxor.u32 %v389, 2147483648
        %v399 = vsel %vm397, %v398, %v390
        %v400 = vsel %vm393, %v396, %v399
        %v401 = vsel %vm391, nan, %v400
        %v402 = vrcp.pop %v298
        %v403 = vrcp.pop %v401
        %v404 = vmul.f32 %v298, %v402
        %v405 = vmul.f32 %v401, %v403
        %v406 = vsub.f32 2.0, %v404
        %v407 = vsub.f32 2.0, %v405
        %v408 = vmul.f32 %v402, %v406
        %v409 = vmul.f32 %v403, %v407
        %v410 = vmul.f32 %v298, %v408
        %v411 = vmul.f32 %v401, %v409
        %v412 = vsub.f32 2.0, %v410
        %v413 = vsub.f32 2.0, %v411
        %v414 = vmul.f32 %v408, %v412
        %v415 = vmul.f32 %v409, %v413
        %v416 = vand.u32 2147483647, %v194
        %vm417 = vcmp.le.f32.partialorder %v416, 0.7853982
        %vm418 = vcmp.lt.s32.totalorder %v194, 0
        %v419 = vand.u32 %v194, 2139095040
        %v420 = vshrl.u32 %v419, 23
        %v421 = vsub.s32 %v420, 127
        %v422 = vand.u32 2147483647, %v194
        %v423 = vand.u32 %v422, 8388607
        %v424 = vor.u32 %v423, 8388608
        %v425 = vsub.s32 0, %v424
        %v426 = vadd.s32 %v421, 1
        %vm427 = vcmp.gt.s32.totalorder %v426, 0
        %v428 = vsel %vm427, %v426, 0
        %v429 = vshrl.u32 %v428, 5
        %v430 = vand.u32 %v428, 31
        %v431 = vsub.s32 32, %v430
        %v432 = vshrl.u32 683565275, %v431
        %v433 = vshll.u32 683565275, %v430
        %v434 = vshrl.u32 2475754826, %v431
        %v435 = vor.u32 %v433, %v434
        %v436 = vshll.u32 2475754826, %v430
        %v437 = vshrl.u32 2131351028, %v431
        %v438 = vor.u32 %v436, %v437
        %v439 = vshll.u32 2131351028, %v430
        %v440 = vshrl.u32 2102212464, %v431
        %v441 = vor.u32 %v439, %v440
        %v442 = vshll.u32 2102212464, %v430
        %v443 = vshrl.u32 920167782, %v431
        %v444 = vor.u32 %v442, %v443
        %v445 = vshll.u32 920167782, %v430
        %v446 = vshrl.u32 1326507024, %v431
        %v447 = vor.u32 %v445, %v446
        %vm448 = vcmp.lt.s32.totalorder %v429, 1
        %vm449 = vcmp.lt.s32.totalorder %v429, 2
        %vm450 = vcmp.lt.s32.totalorder %v429, 3
        %vm451 = vcmp.lt.s32.totalorder %v429, 4
        %v452 = vsel %vm448, %v432, %v435
        %v453 = vsel %vm451, %v441, 2102212464
        %v454 = vsel %vm450, %v438, %v453
        %v455 = vsel %vm449, %v452, %v454
        %v456 = vsel %vm448, %v435, %v438
        %v457 = vsel %vm451, %v444, 920167782
        %v458 = vsel %vm450, %v441, %v457
        %v459 = vsel %vm449, %v456, %v458
        %v460 = vsel %vm448, %v438, %v441
        %v461 = vsel %vm451, %v447, 1326507024
        %v462 = vsel %vm450, %v444, %v461
        %v463 = vsel %vm449, %v460, %v462
        %v464 = vshll.u32 %v424, 8
        %v465 = vmul.u32.u64.compose %v464, %v463
        %v466 = vextract.low.u32 %v465
        %v467 = vextract.high.u32 %v465
        %v468 = vmul.u32.u64.compose %v464, %v459
        %v469 = vextract.low.u32 %v468
        %v470 = vextract.high.u32 %v468
        %v471 = vmul.u32 %v464, %v455
        %v472 = vadd.s32 %v467, %v469
        %vm473 = vc.u32 %v467, %v469
        %v474 = vadd.s32 %v470, 1
        %v475 = vsel %vm473, %v474, %v470
        %v476 = vadd.s32 %v471, %v475
        %v477 = vadd.s32 %v476, 536870912
        %v478 = vshrl.u32 %v477, 30
        %v479 = vshll.u32 %v478, 30
        %v480 = vsub.s32 %v476, %v479
        %vm481 = vcmp.lt.s32.totalorder %v480, 0
        %v482 = vsub.s32 0, %v480
        %v483 = vsel %vm481, %v482, %v480
        %v484 = vclz %v483
        %v485 = vsub.s32 %v484, 2
        %vm486 = vcmp.gt.s32.totalorder 0, %v485
        %v487 = vsel %vm486, 0, %v485
        %v488 = vsub.s32 32, %v487
        %v489 = vshll.u32 %v480, %v487
        %v490 = vshrl.u32 %v472, %v488
        %v491 = vor.u32 %v489, %v490
        %v492 = vsub.s32 4294967266, %v487
        %v493 = vadd.s32 %v492, 127
        %v494 = vshll.u32 %v493, 23
        %v495 = vor.u32 4788187, %v494
        %v496 = vand.u32 2147483647, %v495
        %v498 = vcvt.s32.f32 %v491
        %v499 = vmul.f32 %v498, %v496
        %v500 = vxor.u32 %v499, 2147483648
        %v501 = vsel %vm418, %v500, %v499
        %v502 = vsub.s32 4, %v478
        %v503 = vsel %vm418, %v502, %v478
        %v504 = vsel %vm417, %v194, %v501
        %v505 = vsel %vm417, 0, %v503
        %v506 = vcosq.f32.pop %v504
        %v507 = vsinq.f32.pop %v504
        %vm508 = vweird.f32 %v194
        %v509 = vadd.s32 %v505, 3
        %v510 = vand.u32 %v509, 3
        %vm511 = vcmp.lt.s32.totalorder %v510, 2
        %vm512 = vcmp.eq.s32.totalorder %v510, 0
        %v513 = vxor.u32 %v507, 2147483648
        %v514 = vsel %vm512, %v506, %v513
        %vm515 = vcmp.eq.s32.totalorder %v510, 2
        %v516 = vxor.u32 %v506, 2147483648
        %v517 = vsel %vm515, %v516, %v507
        %v518 = vsel %vm511, %v514, %v517
        %v519 = vsel %vm508, nan, %v518
        %v520 = vand.u32 2147483647, %v195
        %vm521 = vcmp.le.f32.partialorder %v520, 0.7853982
        %vm522 = vcmp.lt.s32.totalorder %v195, 0
        %v523 = vand.u32 %v195, 2139095040
        %v524 = vshrl.u32 %v523, 23
        %v525 = vsub.s32 %v524, 127
        %v526 = vand.u32 2147483647, %v195
        %v527 = vand.u32 %v526, 8388607
        %v528 = vor.u32 %v527, 8388608
        %v529 = vsub.s32 0, %v528
        %v530 = vadd.s32 %v525, 1
        %vm531 = vcmp.gt.s32.totalorder %v530, 0
        %v532 = vsel %vm531, %v530, 0
        %v533 = vshrl.u32 %v532, 5
        %v534 = vand.u32 %v532, 31
        %v535 = vsub.s32 32, %v534
        %v536 = vshrl.u32 683565275, %v535
        %v537 = vshll.u32 683565275, %v534
        %v538 = vshrl.u32 2475754826, %v535
        %v539 = vor.u32 %v537, %v538
        %v540 = vshll.u32 2475754826, %v534
        %v541 = vshrl.u32 2131351028, %v535
        %v542 = vor.u32 %v540, %v541
        %v543 = vshll.u32 2131351028, %v534
        %v544 = vshrl.u32 2102212464, %v535
        %v545 = vor.u32 %v543, %v544
        %v546 = vshll.u32 2102212464, %v534
        %v547 = vshrl.u32 920167782, %v535
        %v548 = vor.u32 %v546, %v547
        %v549 = vshll.u32 920167782, %v534
        %v550 = vshrl.u32 1326507024, %v535
        %v551 = vor.u32 %v549, %v550
        %vm552 = vcmp.lt.s32.totalorder %v533, 1
        %vm553 = vcmp.lt.s32.totalorder %v533, 2
        %vm554 = vcmp.lt.s32.totalorder %v533, 3
        %vm555 = vcmp.lt.s32.totalorder %v533, 4
        %v556 = vsel %vm552, %v536, %v539
        %v557 = vsel %vm555, %v545, 2102212464
        %v558 = vsel %vm554, %v542, %v557
        %v559 = vsel %vm553, %v556, %v558
        %v560 = vsel %vm552, %v539, %v542
        %v561 = vsel %vm555, %v548, 920167782
        %v562 = vsel %vm554, %v545, %v561
        %v563 = vsel %vm553, %v560, %v562
        %v564 = vsel %vm552, %v542, %v545
        %v565 = vsel %vm555, %v551, 1326507024
        %v566 = vsel %vm554, %v548, %v565
        %v567 = vsel %vm553, %v564, %v566
        %v568 = vshll.u32 %v528, 8
        %v569 = vmul.u32.u64.compose %v568, %v567
        %v570 = vextract.low.u32 %v569
        %v571 = vextract.high.u32 %v569
        %v572 = vmul.u32.u64.compose %v568, %v563
        %v573 = vextract.low.u32 %v572
        %v574 = vextract.high.u32 %v572
        %v575 = vmul.u32 %v568, %v559
        %v576 = vadd.s32 %v571, %v573
        %vm577 = vc.u32 %v571, %v573
        %v578 = vadd.s32 %v574, 1
        %v579 = vsel %vm577, %v578, %v574
        %v580 = vadd.s32 %v575, %v579
        %v581 = vadd.s32 %v580, 536870912
        %v582 = vshrl.u32 %v581, 30
        %v583 = vshll.u32 %v582, 30
        %v584 = vsub.s32 %v580, %v583
        %vm585 = vcmp.lt.s32.totalorder %v584, 0
        %v586 = vsub.s32 0, %v584
        %v587 = vsel %vm585, %v586, %v584
        %v588 = vclz %v587
        %v589 = vsub.s32 %v588, 2
        %vm590 = vcmp.gt.s32.totalorder 0, %v589
        %v591 = vsel %vm590, 0, %v589
        %v592 = vsub.s32 32, %v591
        %v593 = vshll.u32 %v584, %v591
        %v594 = vshrl.u32 %v576, %v592
        %v595 = vor.u32 %v593, %v594
        %v596 = vsub.s32 4294967266, %v591
        %v597 = vadd.s32 %v596, 127
        %v598 = vshll.u32 %v597, 23
        %v599 = vor.u32 4788187, %v598
        %v600 = vand.u32 2147483647, %v599
        %v602 = vcvt.s32.f32 %v595
        %v603 = vmul.f32 %v602, %v600
        %v604 = vxor.u32 %v603, 2147483648
        %v605 = vsel %vm522, %v604, %v603
        %v606 = vsub.s32 4, %v582
        %v607 = vsel %vm522, %v606, %v582
        %v608 = vsel %vm521, %v195, %v605
        %v609 = vsel %vm521, 0, %v607
        %v610 = vcosq.f32.pop %v608
        %v611 = vsinq.f32.pop %v608
        %vm612 = vweird.f32 %v195
        %v613 = vadd.s32 %v609, 3
        %v614 = vand.u32 %v613, 3
        %vm615 = vcmp.lt.s32.totalorder %v614, 2
        %vm616 = vcmp.eq.s32.totalorder %v614, 0
        %v617 = vxor.u32 %v611, 2147483648
        %v618 = vsel %vm616, %v610, %v617
        %vm619 = vcmp.eq.s32.totalorder %v614, 2
        %v620 = vxor.u32 %v610, 2147483648
        %v621 = vsel %vm619, %v620, %v611
        %v622 = vsel %vm615, %v618, %v621
        %v623 = vsel %vm612, nan, %v622
        %v624 = vmul.f32 %v519, %v414
        %v625 = vmul.f32 %v623, %v415
        %vm626 = vcmask 130048
        %v628 = vsel %vm626, %v171, 0
        %v631 = vsel %vm626, %v172, 0
        %633 = vmatprep.subr.mxu0 0.0
        %634 = vmatpush1.msra.mxu0 0.0
        %635 = vmatprep.subr.mxu0 0.0
        %636 = vmatpush1.msra.mxu0 0.0
        %637 = vmatprep.subr.mxu0 0.0
        %638 = vmatpush1.msra.mxu0 0.0
        %639 = vmatprep.subr.mxu0 0.0
        %640 = vmatpush1.msra.mxu0 0.0
        %641 = vmatprep.subr.mxu0 0.0
        %642 = vmatpush1.msra.mxu0 0.0
        %643 = vmatprep.subr.mxu0 0.0
        %644 = vmatpush1.msra.mxu0 0.0
        %645 = vmatprep.subr.mxu0 0.0
        %646 = vmatpush1.msra.mxu0 0.0
        %647 = vmatprep.subr.mxu0 0.0
        %648 = vmatpush1.msra.mxu0 0.0
        %649 = vmatprep.subr.mxu0 0.0
        %650 = vmatpush1.msra.mxu0 0.0
        %651 = vmatprep.subr.mxu0 0.0
        %652 = vmatpush1.msra.mxu0 0.0
        %653 = vmatprep.subr.mxu0 0.0
        %654 = vmatpush1.msra.mxu0 0.0
        %655 = vmatprep.subr.mxu0 0.0
        %656 = vmatpush1.msra.mxu0 0.0
        %657 = vmatprep.subr.mxu0 0.0
        %658 = vmatpush1.msra.mxu0 0.0
        %659 = vmatprep.subr.mxu0 0.0
        %660 = vmatpush1.msra.mxu0 0.0
        %661 = vmatprep.subr.mxu0 0.0
        %662 = vmatpush1.msra.mxu0 %v625
        %663 = vmatprep.subr.mxu0 0.0
        %664 = vmatpush1.msra.mxu0 %v624
        %665 = vmatprep.subr.mxu0 0.0
        %666 = vmatpush2.msra.mxu0 0.0
        %667 = vmatprep.subr.mxu0 0.0
        %668 = vmatpush2.msra.mxu0 0.0
        %669 = vmatprep.subr.mxu0 0.0
        %670 = vmatpush2.msra.mxu0 0.0
        %671 = vmatprep.subr.mxu0 0.0
        %672 = vmatpush2.msra.mxu0 0.0
        %673 = vmatprep.subr.mxu0 0.0
        %674 = vmatpush2.msra.mxu0 0.0
        %675 = vmatprep.subr.mxu0 0.0
        %676 = vmatpush2.msra.mxu0 0.0
        %677 = vmatprep.subr.mxu0 0.0
        %678 = vmatpush2.msra.mxu0 0.0
        %679 = vmatprep.subr.mxu0 0.0
        %680 = vmatpush2.msra.mxu0 0.0
        %681 = vmatprep.subr.mxu0 0.0
        %682 = vmatpush2.msra.mxu0 0.0
        %683 = vmatprep.subr.mxu0 0.0
        %684 = vmatpush2.msra.mxu0 0.0
        %685 = vmatprep.subr.mxu0 0.0
        %686 = vmatpush2.msra.mxu0 0.0
        %687 = vmatprep.subr.mxu0 0.0
        %688 = vmatpush2.msra.mxu0 0.0
        %689 = vmatprep.subr.mxu0 0.0
        %690 = vmatpush2.msra.mxu0 0.0
        %691 = vmatprep.subr.mxu0 0.0
        %692 = vmatpush2.msra.mxu0 0.0
        %693 = vmatprep.subr.mxu0 0.0
        %694 = vmatpush2.msra.mxu0 0.0
        %695 = vmatprep.subr.mxu0 0.0
        %696 = vmatpush2.msra.mxu0 0.0
        %697 = vmatprep.mubr.f32.mxu0 0.0
        %698 = vmatmul.mubr.f32.gmra.mxu0 %v628
        %v699 = vpop.f32.mrf.mxu0
        %v700 = vadd.f32 %v179, %v699
        %v701 = vpop.f32.mrf.mxu0
        %702 = vmatprep.mubr.f32.mxu0 0.0
        %703 = vmatmul.mubr.f32.gmra.mxu0 %v631
        %v704 = vpop.f32.mrf.mxu0
        %v705 = vadd.f32 %v180, %v704
        %v706 = vpop.f32.mrf.mxu0
        %707 = vdwg.mxu0
        %v708 = vand.u32 2147483647, %v700
        %vm709 = vcmp.le.f32.partialorder %v708, 0.7853982
        %vm710 = vcmp.lt.s32.totalorder %v700, 0
        %v711 = vand.u32 %v700, 2139095040
        %v712 = vshrl.u32 %v711, 23
        %v713 = vsub.s32 %v712, 127
        %v714 = vand.u32 2147483647, %v700
        %v715 = vand.u32 %v714, 8388607
        %v716 = vor.u32 %v715, 8388608
        %v717 = vsub.s32 0, %v716
        %v718 = vadd.s32 %v713, 1
        %vm719 = vcmp.gt.s32.totalorder %v718, 0
        %v720 = vsel %vm719, %v718, 0
        %v721 = vshrl.u32 %v720, 5
        %v722 = vand.u32 %v720, 31
        %v723 = vsub.s32 32, %v722
        %v724 = vshrl.u32 683565275, %v723
        %v725 = vshll.u32 683565275, %v722
        %v726 = vshrl.u32 2475754826, %v723
        %v727 = vor.u32 %v725, %v726
        %v728 = vshll.u32 2475754826, %v722
        %v729 = vshrl.u32 2131351028, %v723
        %v730 = vor.u32 %v728, %v729
        %v731 = vshll.u32 2131351028, %v722
        %v732 = vshrl.u32 2102212464, %v723
        %v733 = vor.u32 %v731, %v732
        %v734 = vshll.u32 2102212464, %v722
        %v735 = vshrl.u32 920167782, %v723
        %v736 = vor.u32 %v734, %v735
        %v737 = vshll.u32 920167782, %v722
        %v738 = vshrl.u32 1326507024, %v723
        %v739 = vor.u32 %v737, %v738
        %vm740 = vcmp.lt.s32.totalorder %v721, 1
        %vm741 = vcmp.lt.s32.totalorder %v721, 2
        %vm742 = vcmp.lt.s32.totalorder %v721, 3
        %vm743 = vcmp.lt.s32.totalorder %v721, 4
        %v744 = vsel %vm740, %v724, %v727
        %v745 = vsel %vm743, %v733, 2102212464
        %v746 = vsel %vm742, %v730, %v745
        %v747 = vsel %vm741, %v744, %v746
        %v748 = vsel %vm740, %v727, %v730
        %v749 = vsel %vm743, %v736, 920167782
        %v750 = vsel %vm742, %v733, %v749
        %v751 = vsel %vm741, %v748, %v750
        %v752 = vsel %vm740, %v730, %v733
        %v753 = vsel %vm743, %v739, 1326507024
        %v754 = vsel %vm742, %v736, %v753
        %v755 = vsel %vm741, %v752, %v754
        %v756 = vshll.u32 %v716, 8
        %v757 = vmul.u32.u64.compose %v756, %v755
        %v758 = vextract.low.u32 %v757
        %v759 = vextract.high.u32 %v757
        %v760 = vmul.u32.u64.compose %v756, %v751
        %v761 = vextract.low.u32 %v760
        %v762 = vextract.high.u32 %v760
        %v763 = vmul.u32 %v756, %v747
        %v764 = vadd.s32 %v759, %v761
        %vm765 = vc.u32 %v759, %v761
        %v766 = vadd.s32 %v762, 1
        %v767 = vsel %vm765, %v766, %v762
        %v768 = vadd.s32 %v763, %v767
        %v769 = vadd.s32 %v768, 536870912
        %v770 = vshrl.u32 %v769, 30
        %v771 = vshll.u32 %v770, 30
        %v772 = vsub.s32 %v768, %v771
        %vm773 = vcmp.lt.s32.totalorder %v772, 0
        %v774 = vsub.s32 0, %v772
        %v775 = vsel %vm773, %v774, %v772
        %v776 = vclz %v775
        %v777 = vsub.s32 %v776, 2
        %vm778 = vcmp.gt.s32.totalorder 0, %v777
        %v779 = vsel %vm778, 0, %v777
        %v780 = vsub.s32 32, %v779
        %v781 = vshll.u32 %v772, %v779
        %v782 = vshrl.u32 %v764, %v780
        %v783 = vor.u32 %v781, %v782
        %v784 = vsub.s32 4294967266, %v779
        %v785 = vadd.s32 %v784, 127
        %v786 = vshll.u32 %v785, 23
        %v787 = vor.u32 4788187, %v786
        %v788 = vand.u32 2147483647, %v787
        %v790 = vcvt.s32.f32 %v783
        %v791 = vmul.f32 %v790, %v788
        %v792 = vxor.u32 %v791, 2147483648
        %v793 = vsel %vm710, %v792, %v791
        %v794 = vsub.s32 4, %v770
        %v795 = vsel %vm710, %v794, %v770
        %v796 = vsel %vm709, %v700, %v793
        %v797 = vsel %vm709, 0, %v795
        %v798 = vcosq.f32.pop %v796
        %v799 = vsinq.f32.pop %v796
        %vm800 = vweird.f32 %v700
        %v801 = vand.u32 %v797, 3
        %vm802 = vcmp.lt.s32.totalorder %v801, 2
        %vm803 = vcmp.eq.s32.totalorder %v801, 0
        %v804 = vxor.u32 %v799, 2147483648
        %v805 = vsel %vm803, %v798, %v804
        %vm806 = vcmp.eq.s32.totalorder %v801, 2
        %v807 = vxor.u32 %v798, 2147483648
        %v808 = vsel %vm806, %v807, %v799
        %v809 = vsel %vm802, %v805, %v808
        %v810 = vsel %vm800, nan, %v809
        %v811 = vand.u32 2147483647, %v705
        %vm812 = vcmp.le.f32.partialorder %v811, 0.7853982
        %vm813 = vcmp.lt.s32.totalorder %v705, 0
        %v814 = vand.u32 %v705, 2139095040
        %v815 = vshrl.u32 %v814, 23
        %v816 = vsub.s32 %v815, 127
        %v817 = vand.u32 2147483647, %v705
        %v818 = vand.u32 %v817, 8388607
        %v819 = vor.u32 %v818, 8388608
        %v820 = vsub.s32 0, %v819
        %v821 = vadd.s32 %v816, 1
        %vm822 = vcmp.gt.s32.totalorder %v821, 0
        %v823 = vsel %vm822, %v821, 0
        %v824 = vshrl.u32 %v823, 5
        %v825 = vand.u32 %v823, 31
        %v826 = vsub.s32 32, %v825
        %v827 = vshrl.u32 683565275, %v826
        %v828 = vshll.u32 683565275, %v825
        %v829 = vshrl.u32 2475754826, %v826
        %v830 = vor.u32 %v828, %v829
        %v831 = vshll.u32 2475754826, %v825
        %v832 = vshrl.u32 2131351028, %v826
        %v833 = vor.u32 %v831, %v832
        %v834 = vshll.u32 2131351028, %v825
        %v835 = vshrl.u32 2102212464, %v826
        %v836 = vor.u32 %v834, %v835
        %v837 = vshll.u32 2102212464, %v825
        %v838 = vshrl.u32 920167782, %v826
        %v839 = vor.u32 %v837, %v838
        %v840 = vshll.u32 920167782, %v825
        %v841 = vshrl.u32 1326507024, %v826
        %v842 = vor.u32 %v840, %v841
        %vm843 = vcmp.lt.s32.totalorder %v824, 1
        %vm844 = vcmp.lt.s32.totalorder %v824, 2
        %vm845 = vcmp.lt.s32.totalorder %v824, 3
        %vm846 = vcmp.lt.s32.totalorder %v824, 4
        %v847 = vsel %vm843, %v827, %v830
        %v848 = vsel %vm846, %v836, 2102212464
        %v849 = vsel %vm845, %v833, %v848
        %v850 = vsel %vm844, %v847, %v849
        %v851 = vsel %vm843, %v830, %v833
        %v852 = vsel %vm846, %v839, 920167782
        %v853 = vsel %vm845, %v836, %v852
        %v854 = vsel %vm844, %v851, %v853
        %v855 = vsel %vm843, %v833, %v836
        %v856 = vsel %vm846, %v842, 1326507024
        %v857 = vsel %vm845, %v839, %v856
        %v858 = vsel %vm844, %v855, %v857
        %v859 = vshll.u32 %v819, 8
        %v860 = vmul.u32.u64.compose %v859, %v858
        %v861 = vextract.low.u32 %v860
        %v862 = vextract.high.u32 %v860
        %v863 = vmul.u32.u64.compose %v859, %v854
        %v864 = vextract.low.u32 %v863
        %v865 = vextract.high.u32 %v863
        %v866 = vmul.u32 %v859, %v850
        %v867 = vadd.s32 %v862, %v864
        %vm868 = vc.u32 %v862, %v864
        %v869 = vadd.s32 %v865, 1
        %v870 = vsel %vm868, %v869, %v865
        %v871 = vadd.s32 %v866, %v870
        %v872 = vadd.s32 %v871, 536870912
        %v873 = vshrl.u32 %v872, 30
        %v874 = vshll.u32 %v873, 30
        %v875 = vsub.s32 %v871, %v874
        %vm876 = vcmp.lt.s32.totalorder %v875, 0
        %v877 = vsub.s32 0, %v875
        %v878 = vsel %vm876, %v877, %v875
        %v879 = vclz %v878
        %v880 = vsub.s32 %v879, 2
        %vm881 = vcmp.gt.s32.totalorder 0, %v880
        %v882 = vsel %vm881, 0, %v880
        %v883 = vsub.s32 32, %v882
        %v884 = vshll.u32 %v875, %v882
        %v885 = vshrl.u32 %v867, %v883
        %v886 = vor.u32 %v884, %v885
        %v887 = vsub.s32 4294967266, %v882
        %v888 = vadd.s32 %v887, 127
        %v889 = vshll.u32 %v888, 23
        %v890 = vor.u32 4788187, %v889
        %v891 = vand.u32 2147483647, %v890
        %v893 = vcvt.s32.f32 %v886
        %v894 = vmul.f32 %v893, %v891
        %v895 = vxor.u32 %v894, 2147483648
        %v896 = vsel %vm813, %v895, %v894
        %v897 = vsub.s32 4, %v873
        %v898 = vsel %vm813, %v897, %v873
        %v899 = vsel %vm812, %v705, %v896
        %v900 = vsel %vm812, 0, %v898
        %v901 = vcosq.f32.pop %v899
        %v902 = vsinq.f32.pop %v899
        %vm903 = vweird.f32 %v705
        %v904 = vand.u32 %v900, 3
        %vm905 = vcmp.lt.s32.totalorder %v904, 2
        %vm906 = vcmp.eq.s32.totalorder %v904, 0
        %v907 = vxor.u32 %v902, 2147483648
        %v908 = vsel %vm906, %v901, %v907
        %vm909 = vcmp.eq.s32.totalorder %v904, 2
        %v910 = vxor.u32 %v901, 2147483648
        %v911 = vsel %vm909, %v910, %v902
        %v912 = vsel %vm905, %v908, %v911
        %v913 = vsel %vm903, nan, %v912
        %v914 = vrcp.pop %v810
        %v915 = vrcp.pop %v913
        %v916 = vmul.f32 %v810, %v914
        %v917 = vmul.f32 %v913, %v915
        %v918 = vsub.f32 2.0, %v916
        %v919 = vsub.f32 2.0, %v917
        %v920 = vmul.f32 %v914, %v918
        %v921 = vmul.f32 %v915, %v919
        %v922 = vmul.f32 %v810, %v920
        %v923 = vmul.f32 %v913, %v921
        %v924 = vsub.f32 2.0, %v922
        %v925 = vsub.f32 2.0, %v923
        %v926 = vmul.f32 %v920, %v924
        %v927 = vmul.f32 %v921, %v925
        %v928 = vand.u32 2147483647, %v700
        %vm929 = vcmp.le.f32.partialorder %v928, 0.7853982
        %vm930 = vcmp.lt.s32.totalorder %v700, 0
        %v931 = vand.u32 %v700, 2139095040
        %v932 = vshrl.u32 %v931, 23
        %v933 = vsub.s32 %v932, 127
        %v934 = vand.u32 2147483647, %v700
        %v935 = vand.u32 %v934, 8388607
        %v936 = vor.u32 %v935, 8388608
        %v937 = vsub.s32 0, %v936
        %v938 = vadd.s32 %v933, 1
        %vm939 = vcmp.gt.s32.totalorder %v938, 0
        %v940 = vsel %vm939, %v938, 0
        %v941 = vshrl.u32 %v940, 5
        %v942 = vand.u32 %v940, 31
        %v943 = vsub.s32 32, %v942
        %v944 = vshrl.u32 683565275, %v943
        %v945 = vshll.u32 683565275, %v942
        %v946 = vshrl.u32 2475754826, %v943
        %v947 = vor.u32 %v945, %v946
        %v948 = vshll.u32 2475754826, %v942
        %v949 = vshrl.u32 2131351028, %v943
        %v950 = vor.u32 %v948, %v949
        %v951 = vshll.u32 2131351028, %v942
        %v952 = vshrl.u32 2102212464, %v943
        %v953 = vor.u32 %v951, %v952
        %v954 = vshll.u32 2102212464, %v942
        %v955 = vshrl.u32 920167782, %v943
        %v956 = vor.u32 %v954, %v955
        %v957 = vshll.u32 920167782, %v942
        %v958 = vshrl.u32 1326507024, %v943
        %v959 = vor.u32 %v957, %v958
        %vm960 = vcmp.lt.s32.totalorder %v941, 1
        %vm961 = vcmp.lt.s32.totalorder %v941, 2
        %vm962 = vcmp.lt.s32.totalorder %v941, 3
        %vm963 = vcmp.lt.s32.totalorder %v941, 4
        %v964 = vsel %vm960, %v944, %v947
        %v965 = vsel %vm963, %v953, 2102212464
        %v966 = vsel %vm962, %v950, %v965
        %v967 = vsel %vm961, %v964, %v966
        %v968 = vsel %vm960, %v947, %v950
        %v969 = vsel %vm963, %v956, 920167782
        %v970 = vsel %vm962, %v953, %v969
        %v971 = vsel %vm961, %v968, %v970
        %v972 = vsel %vm960, %v950, %v953
        %v973 = vsel %vm963, %v959, 1326507024
        %v974 = vsel %vm962, %v956, %v973
        %v975 = vsel %vm961, %v972, %v974
        %v976 = vshll.u32 %v936, 8
        %v977 = vmul.u32.u64.compose %v976, %v975
        %v978 = vextract.low.u32 %v977
        %v979 = vextract.high.u32 %v977
        %v980 = vmul.u32.u64.compose %v976, %v971
        %v981 = vextract.low.u32 %v980
        %v982 = vextract.high.u32 %v980
        %v983 = vmul.u32 %v976, %v967
        %v984 = vadd.s32 %v979, %v981
        %vm985 = vc.u32 %v979, %v981
        %v986 = vadd.s32 %v982, 1
        %v987 = vsel %vm985, %v986, %v982
        %v988 = vadd.s32 %v983, %v987
        %v989 = vadd.s32 %v988, 536870912
        %v990 = vshrl.u32 %v989, 30
        %v991 = vshll.u32 %v990, 30
        %v992 = vsub.s32 %v988, %v991
        %vm993 = vcmp.lt.s32.totalorder %v992, 0
        %v994 = vsub.s32 0, %v992
        %v995 = vsel %vm993, %v994, %v992
        %v996 = vclz %v995
        %v997 = vsub.s32 %v996, 2
        %vm998 = vcmp.gt.s32.totalorder 0, %v997
        %v999 = vsel %vm998, 0, %v997
        %v1000 = vsub.s32 32, %v999
        %v1001 = vshll.u32 %v992, %v999
        %v1002 = vshrl.u32 %v984, %v1000
        %v1003 = vor.u32 %v1001, %v1002
        %v1004 = vsub.s32 4294967266, %v999
        %v1005 = vadd.s32 %v1004, 127
        %v1006 = vshll.u32 %v1005, 23
        %v1007 = vor.u32 4788187, %v1006
        %v1008 = vand.u32 2147483647, %v1007
        %v1010 = vcvt.s32.f32 %v1003
        %v1011 = vmul.f32 %v1010, %v1008
        %v1012 = vxor.u32 %v1011, 2147483648
        %v1013 = vsel %vm930, %v1012, %v1011
        %v1014 = vsub.s32 4, %v990
        %v1015 = vsel %vm930, %v1014, %v990
        %v1016 = vsel %vm929, %v700, %v1013
        %v1017 = vsel %vm929, 0, %v1015
        %v1018 = vcosq.f32.pop %v1016
        %v1019 = vsinq.f32.pop %v1016
        %vm1020 = vweird.f32 %v700
        %v1021 = vadd.s32 %v1017, 3
        %v1022 = vand.u32 %v1021, 3
        %vm1023 = vcmp.lt.s32.totalorder %v1022, 2
        %vm1024 = vcmp.eq.s32.totalorder %v1022, 0
        %v1025 = vxor.u32 %v1019, 2147483648
        %v1026 = vsel %vm1024, %v1018, %v1025
        %vm1027 = vcmp.eq.s32.totalorder %v1022, 2
        %v1028 = vxor.u32 %v1018, 2147483648
        %v1029 = vsel %vm1027, %v1028, %v1019
        %v1030 = vsel %vm1023, %v1026, %v1029
        %v1031 = vsel %vm1020, nan, %v1030
        %v1032 = vand.u32 2147483647, %v705
        %vm1033 = vcmp.le.f32.partialorder %v1032, 0.7853982
        %vm1034 = vcmp.lt.s32.totalorder %v705, 0
        %v1035 = vand.u32 %v705, 2139095040
        %v1036 = vshrl.u32 %v1035, 23
        %v1037 = vsub.s32 %v1036, 127
        %v1038 = vand.u32 2147483647, %v705
        %v1039 = vand.u32 %v1038, 8388607
        %v1040 = vor.u32 %v1039, 8388608
        %v1041 = vsub.s32 0, %v1040
        %v1042 = vadd.s32 %v1037, 1
        %vm1043 = vcmp.gt.s32.totalorder %v1042, 0
        %v1044 = vsel %vm1043, %v1042, 0
        %v1045 = vshrl.u32 %v1044, 5
        %v1046 = vand.u32 %v1044, 31
        %v1047 = vsub.s32 32, %v1046
        %v1048 = vshrl.u32 683565275, %v1047
        %v1049 = vshll.u32 683565275, %v1046
        %v1050 = vshrl.u32 2475754826, %v1047
        %v1051 = vor.u32 %v1049, %v1050
        %v1052 = vshll.u32 2475754826, %v1046
        %v1053 = vshrl.u32 2131351028, %v1047
        %v1054 = vor.u32 %v1052, %v1053
        %v1055 = vshll.u32 2131351028, %v1046
        %v1056 = vshrl.u32 2102212464, %v1047
        %v1057 = vor.u32 %v1055, %v1056
        %v1058 = vshll.u32 2102212464, %v1046
        %v1059 = vshrl.u32 920167782, %v1047
        %v1060 = vor.u32 %v1058, %v1059
        %v1061 = vshll.u32 920167782, %v1046
        %v1062 = vshrl.u32 1326507024, %v1047
        %v1063 = vor.u32 %v1061, %v1062
        %vm1064 = vcmp.lt.s32.totalorder %v1045, 1
        %vm1065 = vcmp.lt.s32.totalorder %v1045, 2
        %vm1066 = vcmp.lt.s32.totalorder %v1045, 3
        %vm1067 = vcmp.lt.s32.totalorder %v1045, 4
        %v1068 = vsel %vm1064, %v1048, %v1051
        %v1069 = vsel %vm1067, %v1057, 2102212464
        %v1070 = vsel %vm1066, %v1054, %v1069
        %v1071 = vsel %vm1065, %v1068, %v1070
        %v1072 = vsel %vm1064, %v1051, %v1054
        %v1073 = vsel %vm1067, %v1060, 920167782
        %v1074 = vsel %vm1066, %v1057, %v1073
        %v1075 = vsel %vm1065, %v1072, %v1074
        %v1076 = vsel %vm1064, %v1054, %v1057
        %v1077 = vsel %vm1067, %v1063, 1326507024
        %v1078 = vsel %vm1066, %v1060, %v1077
        %v1079 = vsel %vm1065, %v1076, %v1078
        %v1080 = vshll.u32 %v1040, 8
        %v1081 = vmul.u32.u64.compose %v1080, %v1079
        %v1082 = vextract.low.u32 %v1081
        %v1083 = vextract.high.u32 %v1081
        %v1084 = vmul.u32.u64.compose %v1080, %v1075
        %v1085 = vextract.low.u32 %v1084
        %v1086 = vextract.high.u32 %v1084
        %v1087 = vmul.u32 %v1080, %v1071
        %v1088 = vadd.s32 %v1083, %v1085
        %vm1089 = vc.u32 %v1083, %v1085
        %v1090 = vadd.s32 %v1086, 1
        %v1091 = vsel %vm1089, %v1090, %v1086
        %v1092 = vadd.s32 %v1087, %v1091
        %v1093 = vadd.s32 %v1092, 536870912
        %v1094 = vshrl.u32 %v1093, 30
        %v1095 = vshll.u32 %v1094, 30
        %v1096 = vsub.s32 %v1092, %v1095
        %vm1097 = vcmp.lt.s32.totalorder %v1096, 0
        %v1098 = vsub.s32 0, %v1096
        %v1099 = vsel %vm1097, %v1098, %v1096
        %v1100 = vclz %v1099
        %v1101 = vsub.s32 %v1100, 2
        %vm1102 = vcmp.gt.s32.totalorder 0, %v1101
        %v1103 = vsel %vm1102, 0, %v1101
        %v1104 = vsub.s32 32, %v1103
        %v1105 = vshll.u32 %v1096, %v1103
        %v1106 = vshrl.u32 %v1088, %v1104
        %v1107 = vor.u32 %v1105, %v1106
        %v1108 = vsub.s32 4294967266, %v1103
        %v1109 = vadd.s32 %v1108, 127
        %v1110 = vshll.u32 %v1109, 23
        %v1111 = vor.u32 4788187, %v1110
        %v1112 = vand.u32 2147483647, %v1111
        %v1114 = vcvt.s32.f32 %v1107
        %v1115 = vmul.f32 %v1114, %v1112
        %v1116 = vxor.u32 %v1115, 2147483648
        %v1117 = vsel %vm1034, %v1116, %v1115
        %v1118 = vsub.s32 4, %v1094
        %v1119 = vsel %vm1034, %v1118, %v1094
        %v1120 = vsel %vm1033, %v705, %v1117
        %v1121 = vsel %vm1033, 0, %v1119
        %v1122 = vcosq.f32.pop %v1120
        %v1123 = vsinq.f32.pop %v1120
        %vm1124 = vweird.f32 %v705
        %v1125 = vadd.s32 %v1121, 3
        %v1126 = vand.u32 %v1125, 3
        %vm1127 = vcmp.lt.s32.totalorder %v1126, 2
        %vm1128 = vcmp.eq.s32.totalorder %v1126, 0
        %v1129 = vxor.u32 %v1123, 2147483648
        %v1130 = vsel %vm1128, %v1122, %v1129
        %vm1131 = vcmp.eq.s32.totalorder %v1126, 2
        %v1132 = vxor.u32 %v1122, 2147483648
        %v1133 = vsel %vm1131, %v1132, %v1123
        %v1134 = vsel %vm1127, %v1130, %v1133
        %v1135 = vsel %vm1124, nan, %v1134
        %v1136 = vmul.f32 %v1031, %v926
        %v1137 = vmul.f32 %v1135, %v927
        %v1139 = vsel %vm626, %v173, 0
        %v1142 = vsel %vm626, %v174, 0
        %1144 = vmatprep.subr.mxu0 0.0
        %1145 = vmatpush1.msra.mxu0 0.0
        %1146 = vmatprep.subr.mxu0 0.0
        %1147 = vmatpush1.msra.mxu0 0.0
        %1148 = vmatprep.subr.mxu0 0.0
        %1149 = vmatpush1.msra.mxu0 0.0
        %1150 = vmatprep.subr.mxu0 0.0
        %1151 = vmatpush1.msra.mxu0 0.0
        %1152 = vmatprep.subr.mxu0 0.0
        %1153 = vmatpush1.msra.mxu0 0.0
        %1154 = vmatprep.subr.mxu0 0.0
        %1155 = vmatpush1.msra.mxu0 0.0
        %1156 = vmatprep.subr.mxu0 0.0
        %1157 = vmatpush1.msra.mxu0 0.0
        %1158 = vmatprep.subr.mxu0 0.0
        %1159 = vmatpush1.msra.mxu0 0.0
        %1160 = vmatprep.subr.mxu0 0.0
        %1161 = vmatpush1.msra.mxu0 0.0
        %1162 = vmatprep.subr.mxu0 0.0
        %1163 = vmatpush1.msra.mxu0 0.0
        %1164 = vmatprep.subr.mxu0 0.0
        %1165 = vmatpush1.msra.mxu0 0.0
        %1166 = vmatprep.subr.mxu0 0.0
        %1167 = vmatpush1.msra.mxu0 0.0
        %1168 = vmatprep.subr.mxu0 0.0
        %1169 = vmatpush1.msra.mxu0 0.0
        %1170 = vmatprep.subr.mxu0 0.0
        %1171 = vmatpush1.msra.mxu0 0.0
        %1172 = vmatprep.subr.mxu0 0.0
        %1173 = vmatpush1.msra.mxu0 %v1137
        %1174 = vmatprep.subr.mxu0 0.0
        %1175 = vmatpush1.msra.mxu0 %v1136
        %1176 = vmatprep.subr.mxu0 0.0
        %1177 = vmatpush2.msra.mxu0 0.0
        %1178 = vmatprep.subr.mxu0 0.0
        %1179 = vmatpush2.msra.mxu0 0.0
        %1180 = vmatprep.subr.mxu0 0.0
        %1181 = vmatpush2.msra.mxu0 0.0
        %1182 = vmatprep.subr.mxu0 0.0
        %1183 = vmatpush2.msra.mxu0 0.0
        %1184 = vmatprep.subr.mxu0 0.0
        %1185 = vmatpush2.msra.mxu0 0.0
        %1186 = vmatprep.subr.mxu0 0.0
        %1187 = vmatpush2.msra.mxu0 0.0
        %1188 = vmatprep.subr.mxu0 0.0
        %1189 = vmatpush2.msra.mxu0 0.0
        %1190 = vmatprep.subr.mxu0 0.0
        %1191 = vmatpush2.msra.mxu0 0.0
        %1192 = vmatprep.subr.mxu0 0.0
        %1193 = vmatpush2.msra.mxu0 0.0
        %1194 = vmatprep.subr.mxu0 0.0
        %1195 = vmatpush2.msra.mxu0 0.0
        %1196 = vmatprep.subr.mxu0 0.0
        %1197 = vmatpush2.msra.mxu0 0.0
        %1198 = vmatprep.subr.mxu0 0.0
        %1199 = vmatpush2.msra.mxu0 0.0
        %1200 = vmatprep.subr.mxu0 0.0
        %1201 = vmatpush2.msra.mxu0 0.0
        %1202 = vmatprep.subr.mxu0 0.0
        %1203 = vmatpush2.msra.mxu0 0.0
        %1204 = vmatprep.subr.mxu0 0.0
        %1205 = vmatpush2.msra.mxu0 0.0
        %1206 = vmatprep.subr.mxu0 0.0
        %1207 = vmatpush2.msra.mxu0 0.0
        %1208 = vmatprep.mubr.f32.mxu0 0.0
        %1209 = vmatmul.mubr.f32.gmra.mxu0 %v1139
        %v1210 = vpop.f32.mrf.mxu0
        %v1211 = vadd.f32 %v181, %v1210
        %v1212 = vpop.f32.mrf.mxu0
        %1213 = vmatprep.mubr.f32.mxu0 0.0
        %1214 = vmatmul.mubr.f32.gmra.mxu0 %v1142
        %v1215 = vpop.f32.mrf.mxu0
        %v1216 = vadd.f32 %v182, %v1215
        %v1217 = vpop.f32.mrf.mxu0
        %1218 = vdwg.mxu0
        %v1219 = vand.u32 2147483647, %v1211
        %vm1220 = vcmp.le.f32.partialorder %v1219, 0.7853982
        %vm1221 = vcmp.lt.s32.totalorder %v1211, 0
        %v1222 = vand.u32 %v1211, 2139095040
        %v1223 = vshrl.u32 %v1222, 23
        %v1224 = vsub.s32 %v1223, 127
        %v1225 = vand.u32 2147483647, %v1211
        %v1226 = vand.u32 %v1225, 8388607
        %v1227 = vor.u32 %v1226, 8388608
        %v1228 = vsub.s32 0, %v1227
        %v1229 = vadd.s32 %v1224, 1
        %vm1230 = vcmp.gt.s32.totalorder %v1229, 0
        %v1231 = vsel %vm1230, %v1229, 0
        %v1232 = vshrl.u32 %v1231, 5
        %v1233 = vand.u32 %v1231, 31
        %v1234 = vsub.s32 32, %v1233
        %v1235 = vshrl.u32 683565275, %v1234
        %v1236 = vshll.u32 683565275, %v1233
        %v1237 = vshrl.u32 2475754826, %v1234
        %v1238 = vor.u32 %v1236, %v1237
        %v1239 = vshll.u32 2475754826, %v1233
        %v1240 = vshrl.u32 2131351028, %v1234
        %v1241 = vor.u32 %v1239, %v1240
        %v1242 = vshll.u32 2131351028, %v1233
        %v1243 = vshrl.u32 2102212464, %v1234
        %v1244 = vor.u32 %v1242, %v1243
        %v1245 = vshll.u32 2102212464, %v1233
        %v1246 = vshrl.u32 920167782, %v1234
        %v1247 = vor.u32 %v1245, %v1246
        %v1248 = vshll.u32 920167782, %v1233
        %v1249 = vshrl.u32 1326507024, %v1234
        %v1250 = vor.u32 %v1248, %v1249
        %vm1251 = vcmp.lt.s32.totalorder %v1232, 1
        %vm1252 = vcmp.lt.s32.totalorder %v1232, 2
        %vm1253 = vcmp.lt.s32.totalorder %v1232, 3
        %vm1254 = vcmp.lt.s32.totalorder %v1232, 4
        %v1255 = vsel %vm1251, %v1235, %v1238
        %v1256 = vsel %vm1254, %v1244, 2102212464
        %v1257 = vsel %vm1253, %v1241, %v1256
        %v1258 = vsel %vm1252, %v1255, %v1257
        %v1259 = vsel %vm1251, %v1238, %v1241
        %v1260 = vsel %vm1254, %v1247, 920167782
        %v1261 = vsel %vm1253, %v1244, %v1260
        %v1262 = vsel %vm1252, %v1259, %v1261
        %v1263 = vsel %vm1251, %v1241, %v1244
        %v1264 = vsel %vm1254, %v1250, 1326507024
        %v1265 = vsel %vm1253, %v1247, %v1264
        %v1266 = vsel %vm1252, %v1263, %v1265
        %v1267 = vshll.u32 %v1227, 8
        %v1268 = vmul.u32.u64.compose %v1267, %v1266
        %v1269 = vextract.low.u32 %v1268
        %v1270 = vextract.high.u32 %v1268
        %v1271 = vmul.u32.u64.compose %v1267, %v1262
        %v1272 = vextract.low.u32 %v1271
        %v1273 = vextract.high.u32 %v1271
        %v1274 = vmul.u32 %v1267, %v1258
        %v1275 = vadd.s32 %v1270, %v1272
        %vm1276 = vc.u32 %v1270, %v1272
        %v1277 = vadd.s32 %v1273, 1
        %v1278 = vsel %vm1276, %v1277, %v1273
        %v1279 = vadd.s32 %v1274, %v1278
        %v1280 = vadd.s32 %v1279, 536870912
        %v1281 = vshrl.u32 %v1280, 30
        %v1282 = vshll.u32 %v1281, 30
        %v1283 = vsub.s32 %v1279, %v1282
        %vm1284 = vcmp.lt.s32.totalorder %v1283, 0
        %v1285 = vsub.s32 0, %v1283
        %v1286 = vsel %vm1284, %v1285, %v1283
        %v1287 = vclz %v1286
        %v1288 = vsub.s32 %v1287, 2
        %vm1289 = vcmp.gt.s32.totalorder 0, %v1288
        %v1290 = vsel %vm1289, 0, %v1288
        %v1291 = vsub.s32 32, %v1290
        %v1292 = vshll.u32 %v1283, %v1290
        %v1293 = vshrl.u32 %v1275, %v1291
        %v1294 = vor.u32 %v1292, %v1293
        %v1295 = vsub.s32 4294967266, %v1290
        %v1296 = vadd.s32 %v1295, 127
        %v1297 = vshll.u32 %v1296, 23
        %v1298 = vor.u32 4788187, %v1297
        %v1299 = vand.u32 2147483647, %v1298
        %v1301 = vcvt.s32.f32 %v1294
        %v1302 = vmul.f32 %v1301, %v1299
        %v1303 = vxor.u32 %v1302, 2147483648
        %v1304 = vsel %vm1221, %v1303, %v1302
        %v1305 = vsub.s32 4, %v1281
        %v1306 = vsel %vm1221, %v1305, %v1281
        %v1307 = vsel %vm1220, %v1211, %v1304
        %v1308 = vsel %vm1220, 0, %v1306
        %v1309 = vcosq.f32.pop %v1307
        %v1310 = vsinq.f32.pop %v1307
        %vm1311 = vweird.f32 %v1211
        %v1312 = vand.u32 %v1308, 3
        %vm1313 = vcmp.lt.s32.totalorder %v1312, 2
        %vm1314 = vcmp.eq.s32.totalorder %v1312, 0
        %v1315 = vxor.u32 %v1310, 2147483648
        %v1316 = vsel %vm1314, %v1309, %v1315
        %vm1317 = vcmp.eq.s32.totalorder %v1312, 2
        %v1318 = vxor.u32 %v1309, 2147483648
        %v1319 = vsel %vm1317, %v1318, %v1310
        %v1320 = vsel %vm1313, %v1316, %v1319
        %v1321 = vsel %vm1311, nan, %v1320
        %v1322 = vand.u32 2147483647, %v1216
        %vm1323 = vcmp.le.f32.partialorder %v1322, 0.7853982
        %vm1324 = vcmp.lt.s32.totalorder %v1216, 0
        %v1325 = vand.u32 %v1216, 2139095040
        %v1326 = vshrl.u32 %v1325, 23
        %v1327 = vsub.s32 %v1326, 127
        %v1328 = vand.u32 2147483647, %v1216
        %v1329 = vand.u32 %v1328, 8388607
        %v1330 = vor.u32 %v1329, 8388608
        %v1331 = vsub.s32 0, %v1330
        %v1332 = vadd.s32 %v1327, 1
        %vm1333 = vcmp.gt.s32.totalorder %v1332, 0
        %v1334 = vsel %vm1333, %v1332, 0
        %v1335 = vshrl.u32 %v1334, 5
        %v1336 = vand.u32 %v1334, 31
        %v1337 = vsub.s32 32, %v1336
        %v1338 = vshrl.u32 683565275, %v1337
        %v1339 = vshll.u32 683565275, %v1336
        %v1340 = vshrl.u32 2475754826, %v1337
        %v1341 = vor.u32 %v1339, %v1340
        %v1342 = vshll.u32 2475754826, %v1336
        %v1343 = vshrl.u32 2131351028, %v1337
        %v1344 = vor.u32 %v1342, %v1343
        %v1345 = vshll.u32 2131351028, %v1336
        %v1346 = vshrl.u32 2102212464, %v1337
        %v1347 = vor.u32 %v1345, %v1346
        %v1348 = vshll.u32 2102212464, %v1336
        %v1349 = vshrl.u32 920167782, %v1337
        %v1350 = vor.u32 %v1348, %v1349
        %v1351 = vshll.u32 920167782, %v1336
        %v1352 = vshrl.u32 1326507024, %v1337
        %v1353 = vor.u32 %v1351, %v1352
        %vm1354 = vcmp.lt.s32.totalorder %v1335, 1
        %vm1355 = vcmp.lt.s32.totalorder %v1335, 2
        %vm1356 = vcmp.lt.s32.totalorder %v1335, 3
        %vm1357 = vcmp.lt.s32.totalorder %v1335, 4
        %v1358 = vsel %vm1354, %v1338, %v1341
        %v1359 = vsel %vm1357, %v1347, 2102212464
        %v1360 = vsel %vm1356, %v1344, %v1359
        %v1361 = vsel %vm1355, %v1358, %v1360
        %v1362 = vsel %vm1354, %v1341, %v1344
        %v1363 = vsel %vm1357, %v1350, 920167782
        %v1364 = vsel %vm1356, %v1347, %v1363
        %v1365 = vsel %vm1355, %v1362, %v1364
        %v1366 = vsel %vm1354, %v1344, %v1347
        %v1367 = vsel %vm1357, %v1353, 1326507024
        %v1368 = vsel %vm1356, %v1350, %v1367
        %v1369 = vsel %vm1355, %v1366, %v1368
        %v1370 = vshll.u32 %v1330, 8
        %v1371 = vmul.u32.u64.compose %v1370, %v1369
        %v1372 = vextract.low.u32 %v1371
        %v1373 = vextract.high.u32 %v1371
        %v1374 = vmul.u32.u64.compose %v1370, %v1365
        %v1375 = vextract.low.u32 %v1374
        %v1376 = vextract.high.u32 %v1374
        %v1377 = vmul.u32 %v1370, %v1361
        %v1378 = vadd.s32 %v1373, %v1375
        %vm1379 = vc.u32 %v1373, %v1375
        %v1380 = vadd.s32 %v1376, 1
        %v1381 = vsel %vm1379, %v1380, %v1376
        %v1382 = vadd.s32 %v1377, %v1381
        %v1383 = vadd.s32 %v1382, 536870912
        %v1384 = vshrl.u32 %v1383, 30
        %v1385 = vshll.u32 %v1384, 30
        %v1386 = vsub.s32 %v1382, %v1385
        %vm1387 = vcmp.lt.s32.totalorder %v1386, 0
        %v1388 = vsub.s32 0, %v1386
        %v1389 = vsel %vm1387, %v1388, %v1386
        %v1390 = vclz %v1389
        %v1391 = vsub.s32 %v1390, 2
        %vm1392 = vcmp.gt.s32.totalorder 0, %v1391
        %v1393 = vsel %vm1392, 0, %v1391
        %v1394 = vsub.s32 32, %v1393
        %v1395 = vshll.u32 %v1386, %v1393
        %v1396 = vshrl.u32 %v1378, %v1394
        %v1397 = vor.u32 %v1395, %v1396
        %v1398 = vsub.s32 4294967266, %v1393
        %v1399 = vadd.s32 %v1398, 127
        %v1400 = vshll.u32 %v1399, 23
        %v1401 = vor.u32 4788187, %v1400
        %v1402 = vand.u32 2147483647, %v1401
        %v1404 = vcvt.s32.f32 %v1397
        %v1405 = vmul.f32 %v1404, %v1402
        %v1406 = vxor.u32 %v1405, 2147483648
        %v1407 = vsel %vm1324, %v1406, %v1405
        %v1408 = vsub.s32 4, %v1384
        %v1409 = vsel %vm1324, %v1408, %v1384
        %v1410 = vsel %vm1323, %v1216, %v1407
        %v1411 = vsel %vm1323, 0, %v1409
        %v1412 = vcosq.f32.pop %v1410
        %v1413 = vsinq.f32.pop %v1410
        %vm1414 = vweird.f32 %v1216
        %v1415 = vand.u32 %v1411, 3
        %vm1416 = vcmp.lt.s32.totalorder %v1415, 2
        %vm1417 = vcmp.eq.s32.totalorder %v1415, 0
        %v1418 = vxor.u32 %v1413, 2147483648
        %v1419 = vsel %vm1417, %v1412, %v1418
        %vm1420 = vcmp.eq.s32.totalorder %v1415, 2
        %v1421 = vxor.u32 %v1412, 2147483648
        %v1422 = vsel %vm1420, %v1421, %v1413
        %v1423 = vsel %vm1416, %v1419, %v1422
        %v1424 = vsel %vm1414, nan, %v1423
        %v1425 = vrcp.pop %v1321
        %v1426 = vrcp.pop %v1424
        %v1427 = vmul.f32 %v1321, %v1425
        %v1428 = vmul.f32 %v1424, %v1426
        %v1429 = vsub.f32 2.0, %v1427
        %v1430 = vsub.f32 2.0, %v1428
        %v1431 = vmul.f32 %v1425, %v1429
        %v1432 = vmul.f32 %v1426, %v1430
        %v1433 = vmul.f32 %v1321, %v1431
        %v1434 = vmul.f32 %v1424, %v1432
        %v1435 = vsub.f32 2.0, %v1433
        %v1436 = vsub.f32 2.0, %v1434
        %v1437 = vmul.f32 %v1431, %v1435
        %v1438 = vmul.f32 %v1432, %v1436
        %v1439 = vand.u32 2147483647, %v1211
        %vm1440 = vcmp.le.f32.partialorder %v1439, 0.7853982
        %vm1441 = vcmp.lt.s32.totalorder %v1211, 0
        %v1442 = vand.u32 %v1211, 2139095040
        %v1443 = vshrl.u32 %v1442, 23
        %v1444 = vsub.s32 %v1443, 127
        %v1445 = vand.u32 2147483647, %v1211
        %v1446 = vand.u32 %v1445, 8388607
        %v1447 = vor.u32 %v1446, 8388608
        %v1448 = vsub.s32 0, %v1447
        %v1449 = vadd.s32 %v1444, 1
        %vm1450 = vcmp.gt.s32.totalorder %v1449, 0
        %v1451 = vsel %vm1450, %v1449, 0
        %v1452 = vshrl.u32 %v1451, 5
        %v1453 = vand.u32 %v1451, 31
        %v1454 = vsub.s32 32, %v1453
        %v1455 = vshrl.u32 683565275, %v1454
        %v1456 = vshll.u32 683565275, %v1453
        %v1457 = vshrl.u32 2475754826, %v1454
        %v1458 = vor.u32 %v1456, %v1457
        %v1459 = vshll.u32 2475754826, %v1453
        %v1460 = vshrl.u32 2131351028, %v1454
        %v1461 = vor.u32 %v1459, %v1460
        %v1462 = vshll.u32 2131351028, %v1453
        %v1463 = vshrl.u32 2102212464, %v1454
        %v1464 = vor.u32 %v1462, %v1463
        %v1465 = vshll.u32 2102212464, %v1453
        %v1466 = vshrl.u32 920167782, %v1454
        %v1467 = vor.u32 %v1465, %v1466
        %v1468 = vshll.u32 920167782, %v1453
        %v1469 = vshrl.u32 1326507024, %v1454
        %v1470 = vor.u32 %v1468, %v1469
        %vm1471 = vcmp.lt.s32.totalorder %v1452, 1
        %vm1472 = vcmp.lt.s32.totalorder %v1452, 2
        %vm1473 = vcmp.lt.s32.totalorder %v1452, 3
        %vm1474 = vcmp.lt.s32.totalorder %v1452, 4
        %v1475 = vsel %vm1471, %v1455, %v1458
        %v1476 = vsel %vm1474, %v1464, 2102212464
        %v1477 = vsel %vm1473, %v1461, %v1476
        %v1478 = vsel %vm1472, %v1475, %v1477
        %v1479 = vsel %vm1471, %v1458, %v1461
        %v1480 = vsel %vm1474, %v1467, 920167782
        %v1481 = vsel %vm1473, %v1464, %v1480
        %v1482 = vsel %vm1472, %v1479, %v1481
        %v1483 = vsel %vm1471, %v1461, %v1464
        %v1484 = vsel %vm1474, %v1470, 1326507024
        %v1485 = vsel %vm1473, %v1467, %v1484
        %v1486 = vsel %vm1472, %v1483, %v1485
        %v1487 = vshll.u32 %v1447, 8
        %v1488 = vmul.u32.u64.compose %v1487, %v1486
        %v1489 = vextract.low.u32 %v1488
        %v1490 = vextract.high.u32 %v1488
        %v1491 = vmul.u32.u64.compose %v1487, %v1482
        %v1492 = vextract.low.u32 %v1491
        %v1493 = vextract.high.u32 %v1491
        %v1494 = vmul.u32 %v1487, %v1478
        %v1495 = vadd.s32 %v1490, %v1492
        %vm1496 = vc.u32 %v1490, %v1492
        %v1497 = vadd.s32 %v1493, 1
        %v1498 = vsel %vm1496, %v1497, %v1493
        %v1499 = vadd.s32 %v1494, %v1498
        %v1500 = vadd.s32 %v1499, 536870912
        %v1501 = vshrl.u32 %v1500, 30
        %v1502 = vshll.u32 %v1501, 30
        %v1503 = vsub.s32 %v1499, %v1502
        %vm1504 = vcmp.lt.s32.totalorder %v1503, 0
        %v1505 = vsub.s32 0, %v1503
        %v1506 = vsel %vm1504, %v1505, %v1503
        %v1507 = vclz %v1506
        %v1508 = vsub.s32 %v1507, 2
        %vm1509 = vcmp.gt.s32.totalorder 0, %v1508
        %v1510 = vsel %vm1509, 0, %v1508
        %v1511 = vsub.s32 32, %v1510
        %v1512 = vshll.u32 %v1503, %v1510
        %v1513 = vshrl.u32 %v1495, %v1511
        %v1514 = vor.u32 %v1512, %v1513
        %v1515 = vsub.s32 4294967266, %v1510
        %v1516 = vadd.s32 %v1515, 127
        %v1517 = vshll.u32 %v1516, 23
        %v1518 = vor.u32 4788187, %v1517
        %v1519 = vand.u32 2147483647, %v1518
        %v1521 = vcvt.s32.f32 %v1514
        %v1522 = vmul.f32 %v1521, %v1519
        %v1523 = vxor.u32 %v1522, 2147483648
        %v1524 = vsel %vm1441, %v1523, %v1522
        %v1525 = vsub.s32 4, %v1501
        %v1526 = vsel %vm1441, %v1525, %v1501
        %v1527 = vsel %vm1440, %v1211, %v1524
        %v1528 = vsel %vm1440, 0, %v1526
        %v1529 = vcosq.f32.pop %v1527
        %v1530 = vsinq.f32.pop %v1527
        %vm1531 = vweird.f32 %v1211
        %v1532 = vadd.s32 %v1528, 3
        %v1533 = vand.u32 %v1532, 3
        %vm1534 = vcmp.lt.s32.totalorder %v1533, 2
        %vm1535 = vcmp.eq.s32.totalorder %v1533, 0
        %v1536 = vxor.u32 %v1530, 2147483648
        %v1537 = vsel %vm1535, %v1529, %v1536
        %vm1538 = vcmp.eq.s32.totalorder %v1533, 2
        %v1539 = vxor.u32 %v1529, 2147483648
        %v1540 = vsel %vm1538, %v1539, %v1530
        %v1541 = vsel %vm1534, %v1537, %v1540
        %v1542 = vsel %vm1531, nan, %v1541
        %v1543 = vand.u32 2147483647, %v1216
        %vm1544 = vcmp.le.f32.partialorder %v1543, 0.7853982
        %vm1545 = vcmp.lt.s32.totalorder %v1216, 0
        %v1546 = vand.u32 %v1216, 2139095040
        %v1547 = vshrl.u32 %v1546, 23
        %v1548 = vsub.s32 %v1547, 127
        %v1549 = vand.u32 2147483647, %v1216
        %v1550 = vand.u32 %v1549, 8388607
        %v1551 = vor.u32 %v1550, 8388608
        %v1552 = vsub.s32 0, %v1551
        %v1553 = vadd.s32 %v1548, 1
        %vm1554 = vcmp.gt.s32.totalorder %v1553, 0
        %v1555 = vsel %vm1554, %v1553, 0
        %v1556 = vshrl.u32 %v1555, 5
        %v1557 = vand.u32 %v1555, 31
        %v1558 = vsub.s32 32, %v1557
        %v1559 = vshrl.u32 683565275, %v1558
        %v1560 = vshll.u32 683565275, %v1557
        %v1561 = vshrl.u32 2475754826, %v1558
        %v1562 = vor.u32 %v1560, %v1561
        %v1563 = vshll.u32 2475754826, %v1557
        %v1564 = vshrl.u32 2131351028, %v1558
        %v1565 = vor.u32 %v1563, %v1564
        %v1566 = vshll.u32 2131351028, %v1557
        %v1567 = vshrl.u32 2102212464, %v1558
        %v1568 = vor.u32 %v1566, %v1567
        %v1569 = vshll.u32 2102212464, %v1557
        %v1570 = vshrl.u32 920167782, %v1558
        %v1571 = vor.u32 %v1569, %v1570
        %v1572 = vshll.u32 920167782, %v1557
        %v1573 = vshrl.u32 1326507024, %v1558
        %v1574 = vor.u32 %v1572, %v1573
        %vm1575 = vcmp.lt.s32.totalorder %v1556, 1
        %vm1576 = vcmp.lt.s32.totalorder %v1556, 2
        %vm1577 = vcmp.lt.s32.totalorder %v1556, 3
        %vm1578 = vcmp.lt.s32.totalorder %v1556, 4
        %v1579 = vsel %vm1575, %v1559, %v1562
        %v1580 = vsel %vm1578, %v1568, 2102212464
        %v1581 = vsel %vm1577, %v1565, %v1580
        %v1582 = vsel %vm1576, %v1579, %v1581
        %v1583 = vsel %vm1575, %v1562, %v1565
        %v1584 = vsel %vm1578, %v1571, 920167782
        %v1585 = vsel %vm1577, %v1568, %v1584
        %v1586 = vsel %vm1576, %v1583, %v1585
        %v1587 = vsel %vm1575, %v1565, %v1568
        %v1588 = vsel %vm1578, %v1574, 1326507024
        %v1589 = vsel %vm1577, %v1571, %v1588
        %v1590 = vsel %vm1576, %v1587, %v1589
        %v1591 = vshll.u32 %v1551, 8
        %v1592 = vmul.u32.u64.compose %v1591, %v1590
        %v1593 = vextract.low.u32 %v1592
        %v1594 = vextract.high.u32 %v1592
        %v1595 = vmul.u32.u64.compose %v1591, %v1586
        %v1596 = vextract.low.u32 %v1595
        %v1597 = vextract.high.u32 %v1595
        %v1598 = vmul.u32 %v1591, %v1582
        %v1599 = vadd.s32 %v1594, %v1596
        %vm1600 = vc.u32 %v1594, %v1596
        %v1601 = vadd.s32 %v1597, 1
        %v1602 = vsel %vm1600, %v1601, %v1597
        %v1603 = vadd.s32 %v1598, %v1602
        %v1604 = vadd.s32 %v1603, 536870912
        %v1605 = vshrl.u32 %v1604, 30
        %v1606 = vshll.u32 %v1605, 30
        %v1607 = vsub.s32 %v1603, %v1606
        %vm1608 = vcmp.lt.s32.totalorder %v1607, 0
        %v1609 = vsub.s32 0, %v1607
        %v1610 = vsel %vm1608, %v1609, %v1607
        %v1611 = vclz %v1610
        %v1612 = vsub.s32 %v1611, 2
        %vm1613 = vcmp.gt.s32.totalorder 0, %v1612
        %v1614 = vsel %vm1613, 0, %v1612
        %v1615 = vsub.s32 32, %v1614
        %v1616 = vshll.u32 %v1607, %v1614
        %v1617 = vshrl.u32 %v1599, %v1615
        %v1618 = vor.u32 %v1616, %v1617
        %v1619 = vsub.s32 4294967266, %v1614
        %v1620 = vadd.s32 %v1619, 127
        %v1621 = vshll.u32 %v1620, 23
        %v1622 = vor.u32 4788187, %v1621
        %v1623 = vand.u32 2147483647, %v1622
        %v1625 = vcvt.s32.f32 %v1618
        %v1626 = vmul.f32 %v1625, %v1623
        %v1627 = vxor.u32 %v1626, 2147483648
        %v1628 = vsel %vm1545, %v1627, %v1626
        %v1629 = vsub.s32 4, %v1605
        %v1630 = vsel %vm1545, %v1629, %v1605
        %v1631 = vsel %vm1544, %v1216, %v1628
        %v1632 = vsel %vm1544, 0, %v1630
        %v1633 = vcosq.f32.pop %v1631
        %v1634 = vsinq.f32.pop %v1631
        %vm1635 = vweird.f32 %v1216
        %v1636 = vadd.s32 %v1632, 3
        %v1637 = vand.u32 %v1636, 3
        %vm1638 = vcmp.lt.s32.totalorder %v1637, 2
        %vm1639 = vcmp.eq.s32.totalorder %v1637, 0
        %v1640 = vxor.u32 %v1634, 2147483648
        %v1641 = vsel %vm1639, %v1633, %v1640
        %vm1642 = vcmp.eq.s32.totalorder %v1637, 2
        %v1643 = vxor.u32 %v1633, 2147483648
        %v1644 = vsel %vm1642, %v1643, %v1634
        %v1645 = vsel %vm1638, %v1641, %v1644
        %v1646 = vsel %vm1635, nan, %v1645
        %v1647 = vmul.f32 %v1542, %v1437
        %v1648 = vmul.f32 %v1646, %v1438
        %v1649 = vmul.f32 %v183, %v1647
        %v1650 = vmul.f32 %v184, %v1648
        %v1651 = vadd.f32 %v1649, %v1650
        %v1652 = vrot.slane %v1651, 4
        %v1653 = vadd.f32 %v1651, %v1652
        %v1654 = vrot.slane %v1653, 2
        %v1655 = vadd.f32 %v1653, %v1654
        %v1656 = vrot.slane %v1655, 1
        %v1657 = vadd.f32 %v1655, %v1656
        %v1658 = vadd.f32 %v1657, %v185
        %v1659 = vand.u32 2147483647, %v1658
        %vm1660 = vcmp.le.f32.partialorder %v1659, 0.7853982
        %vm1661 = vcmp.lt.s32.totalorder %v1658, 0
        %v1662 = vand.u32 %v1658, 2139095040
        %v1663 = vshrl.u32 %v1662, 23
        %v1664 = vsub.s32 %v1663, 127
        %v1665 = vand.u32 2147483647, %v1658
        %v1666 = vand.u32 %v1665, 8388607
        %v1667 = vor.u32 %v1666, 8388608
        %v1668 = vsub.s32 0, %v1667
        %v1669 = vadd.s32 %v1664, 1
        %vm1670 = vcmp.gt.s32.totalorder %v1669, 0
        %v1671 = vsel %vm1670, %v1669, 0
        %v1672 = vshrl.u32 %v1671, 5
        %v1673 = vand.u32 %v1671, 31
        %v1674 = vsub.s32 32, %v1673
        %v1675 = vshrl.u32 683565275, %v1674
        %v1676 = vshll.u32 683565275, %v1673
        %v1677 = vshrl.u32 2475754826, %v1674
        %v1678 = vor.u32 %v1676, %v1677
        %v1679 = vshll.u32 2475754826, %v1673
        %v1680 = vshrl.u32 2131351028, %v1674
        %v1681 = vor.u32 %v1679, %v1680
        %v1682 = vshll.u32 2131351028, %v1673
        %v1683 = vshrl.u32 2102212464, %v1674
        %v1684 = vor.u32 %v1682, %v1683
        %v1685 = vshll.u32 2102212464, %v1673
        %v1686 = vshrl.u32 920167782, %v1674
        %v1687 = vor.u32 %v1685, %v1686
        %v1688 = vshll.u32 920167782, %v1673
        %v1689 = vshrl.u32 1326507024, %v1674
        %v1690 = vor.u32 %v1688, %v1689
        %vm1691 = vcmp.lt.s32.totalorder %v1672, 1
        %vm1692 = vcmp.lt.s32.totalorder %v1672, 2
        %vm1693 = vcmp.lt.s32.totalorder %v1672, 3
        %vm1694 = vcmp.lt.s32.totalorder %v1672, 4
        %v1695 = vsel %vm1691, %v1675, %v1678
        %v1696 = vsel %vm1694, %v1684, 2102212464
        %v1697 = vsel %vm1693, %v1681, %v1696
        %v1698 = vsel %vm1692, %v1695, %v1697
        %v1699 = vsel %vm1691, %v1678, %v1681
        %v1700 = vsel %vm1694, %v1687, 920167782
        %v1701 = vsel %vm1693, %v1684, %v1700
        %v1702 = vsel %vm1692, %v1699, %v1701
        %v1703 = vsel %vm1691, %v1681, %v1684
        %v1704 = vsel %vm1694, %v1690, 1326507024
        %v1705 = vsel %vm1693, %v1687, %v1704
        %v1706 = vsel %vm1692, %v1703, %v1705
        %v1707 = vshll.u32 %v1667, 8
        %v1708 = vmul.u32.u64.compose %v1707, %v1706
        %v1709 = vextract.low.u32 %v1708
        %v1710 = vextract.high.u32 %v1708
        %v1711 = vmul.u32.u64.compose %v1707, %v1702
        %v1712 = vextract.low.u32 %v1711
        %v1713 = vextract.high.u32 %v1711
        %v1714 = vmul.u32 %v1707, %v1698
        %v1715 = vadd.s32 %v1710, %v1712
        %vm1716 = vc.u32 %v1710, %v1712
        %v1717 = vadd.s32 %v1713, 1
        %v1718 = vsel %vm1716, %v1717, %v1713
        %v1719 = vadd.s32 %v1714, %v1718
        %v1720 = vadd.s32 %v1719, 536870912
        %v1721 = vshrl.u32 %v1720, 30
        %v1722 = vshll.u32 %v1721, 30
        %v1723 = vsub.s32 %v1719, %v1722
        %vm1724 = vcmp.lt.s32.totalorder %v1723, 0
        %v1725 = vsub.s32 0, %v1723
        %v1726 = vsel %vm1724, %v1725, %v1723
        %v1727 = vclz %v1726
        %v1728 = vsub.s32 %v1727, 2
        %vm1729 = vcmp.gt.s32.totalorder 0, %v1728
        %v1730 = vsel %vm1729, 0, %v1728
        %v1731 = vsub.s32 32, %v1730
        %v1732 = vshll.u32 %v1723, %v1730
        %v1733 = vshrl.u32 %v1715, %v1731
        %v1734 = vor.u32 %v1732, %v1733
        %v1735 = vsub.s32 4294967266, %v1730
        %v1736 = vadd.s32 %v1735, 127
        %v1737 = vshll.u32 %v1736, 23
        %v1738 = vor.u32 4788187, %v1737
        %v1739 = vand.u32 2147483647, %v1738
        %v1741 = vcvt.s32.f32 %v1734
        %v1742 = vmul.f32 %v1741, %v1739
        %v1743 = vxor.u32 %v1742, 2147483648
        %v1744 = vsel %vm1661, %v1743, %v1742
        %v1745 = vsub.s32 4, %v1721
        %v1746 = vsel %vm1661, %v1745, %v1721
        %v1747 = vsel %vm1660, %v1658, %v1744
        %v1748 = vsel %vm1660, 0, %v1746
        %v1749 = vcosq.f32.pop %v1747
        %v1750 = vsinq.f32.pop %v1747
        %vm1751 = vweird.f32 %v1658
        %v1752 = vand.u32 %v1748, 3
        %vm1753 = vcmp.lt.s32.totalorder %v1752, 2
        %vm1754 = vcmp.eq.s32.totalorder %v1752, 0
        %v1755 = vxor.u32 %v1750, 2147483648
        %v1756 = vsel %vm1754, %v1749, %v1755
        %vm1757 = vcmp.eq.s32.totalorder %v1752, 2
        %v1758 = vxor.u32 %v1749, 2147483648
        %v1759 = vsel %vm1757, %v1758, %v1750
        %v1760 = vsel %vm1753, %v1756, %v1759
        %v1761 = vsel %vm1751, nan, %v1760
        %v1762 = vrcp.pop %v1761
        %v1763 = vmul.f32 %v1761, %v1762
        %v1764 = vsub.f32 2.0, %v1763
        %v1765 = vmul.f32 %v1762, %v1764
        %v1766 = vmul.f32 %v1761, %v1765
        %v1767 = vsub.f32 2.0, %v1766
        %v1768 = vmul.f32 %v1765, %v1767
        %v1769 = vand.u32 2147483647, %v1658
        %vm1770 = vcmp.le.f32.partialorder %v1769, 0.7853982
        %vm1771 = vcmp.lt.s32.totalorder %v1658, 0
        %v1772 = vand.u32 %v1658, 2139095040
        %v1773 = vshrl.u32 %v1772, 23
        %v1774 = vsub.s32 %v1773, 127
        %v1775 = vand.u32 2147483647, %v1658
        %v1776 = vand.u32 %v1775, 8388607
        %v1777 = vor.u32 %v1776, 8388608
        %v1778 = vsub.s32 0, %v1777
        %v1779 = vadd.s32 %v1774, 1
        %vm1780 = vcmp.gt.s32.totalorder %v1779, 0
        %v1781 = vsel %vm1780, %v1779, 0
        %v1782 = vshrl.u32 %v1781, 5
        %v1783 = vand.u32 %v1781, 31
        %v1784 = vsub.s32 32, %v1783
        %v1785 = vshrl.u32 683565275, %v1784
        %v1786 = vshll.u32 683565275, %v1783
        %v1787 = vshrl.u32 2475754826, %v1784
        %v1788 = vor.u32 %v1786, %v1787
        %v1789 = vshll.u32 2475754826, %v1783
        %v1790 = vshrl.u32 2131351028, %v1784
        %v1791 = vor.u32 %v1789, %v1790
        %v1792 = vshll.u32 2131351028, %v1783
        %v1793 = vshrl.u32 2102212464, %v1784
        %v1794 = vor.u32 %v1792, %v1793
        %v1795 = vshll.u32 2102212464, %v1783
        %v1796 = vshrl.u32 920167782, %v1784
        %v1797 = vor.u32 %v1795, %v1796
        %v1798 = vshll.u32 920167782, %v1783
        %v1799 = vshrl.u32 1326507024, %v1784
        %v1800 = vor.u32 %v1798, %v1799
        %vm1801 = vcmp.lt.s32.totalorder %v1782, 1
        %vm1802 = vcmp.lt.s32.totalorder %v1782, 2
        %vm1803 = vcmp.lt.s32.totalorder %v1782, 3
        %vm1804 = vcmp.lt.s32.totalorder %v1782, 4
        %v1805 = vsel %vm1801, %v1785, %v1788
        %v1806 = vsel %vm1804, %v1794, 2102212464
        %v1807 = vsel %vm1803, %v1791, %v1806
        %v1808 = vsel %vm1802, %v1805, %v1807
        %v1809 = vsel %vm1801, %v1788, %v1791
        %v1810 = vsel %vm1804, %v1797, 920167782
        %v1811 = vsel %vm1803, %v1794, %v1810
        %v1812 = vsel %vm1802, %v1809, %v1811
        %v1813 = vsel %vm1801, %v1791, %v1794
        %v1814 = vsel %vm1804, %v1800, 1326507024
        %v1815 = vsel %vm1803, %v1797, %v1814
        %v1816 = vsel %vm1802, %v1813, %v1815
        %v1817 = vshll.u32 %v1777, 8
        %v1818 = vmul.u32.u64.compose %v1817, %v1816
        %v1819 = vextract.low.u32 %v1818
        %v1820 = vextract.high.u32 %v1818
        %v1821 = vmul.u32.u64.compose %v1817, %v1812
        %v1822 = vextract.low.u32 %v1821
        %v1823 = vextract.high.u32 %v1821
        %v1824 = vmul.u32 %v1817, %v1808
        %v1825 = vadd.s32 %v1820, %v1822
        %vm1826 = vc.u32 %v1820, %v1822
        %v1827 = vadd.s32 %v1823, 1
        %v1828 = vsel %vm1826, %v1827, %v1823
        %v1829 = vadd.s32 %v1824, %v1828
        %v1830 = vadd.s32 %v1829, 536870912
        %v1831 = vshrl.u32 %v1830, 30
        %v1832 = vshll.u32 %v1831, 30
        %v1833 = vsub.s32 %v1829, %v1832
        %vm1834 = vcmp.lt.s32.totalorder %v1833, 0
        %v1835 = vsub.s32 0, %v1833
        %v1836 = vsel %vm1834, %v1835, %v1833
        %v1837 = vclz %v1836
        %v1838 = vsub.s32 %v1837, 2
        %vm1839 = vcmp.gt.s32.totalorder 0, %v1838
        %v1840 = vsel %vm1839, 0, %v1838
        %v1841 = vsub.s32 32, %v1840
        %v1842 = vshll.u32 %v1833, %v1840
        %v1843 = vshrl.u32 %v1825, %v1841
        %v1844 = vor.u32 %v1842, %v1843
        %v1845 = vsub.s32 4294967266, %v1840
        %v1846 = vadd.s32 %v1845, 127
        %v1847 = vshll.u32 %v1846, 23
        %v1848 = vor.u32 4788187, %v1847
        %v1849 = vand.u32 2147483647, %v1848
        %v1851 = vcvt.s32.f32 %v1844
        %v1852 = vmul.f32 %v1851, %v1849
        %v1853 = vxor.u32 %v1852, 2147483648
        %v1854 = vsel %vm1771, %v1853, %v1852
        %v1855 = vsub.s32 4, %v1831
        %v1856 = vsel %vm1771, %v1855, %v1831
        %v1857 = vsel %vm1770, %v1658, %v1854
        %v1858 = vsel %vm1770, 0, %v1856
        %v1859 = vcosq.f32.pop %v1857
        %v1860 = vsinq.f32.pop %v1857
        %vm1861 = vweird.f32 %v1658
        %v1862 = vadd.s32 %v1858, 3
        %v1863 = vand.u32 %v1862, 3
        %vm1864 = vcmp.lt.s32.totalorder %v1863, 2
        %vm1865 = vcmp.eq.s32.totalorder %v1863, 0
        %v1866 = vxor.u32 %v1860, 2147483648
        %v1867 = vsel %vm1865, %v1859, %v1866
        %vm1868 = vcmp.eq.s32.totalorder %v1863, 2
        %v1869 = vxor.u32 %v1859, 2147483648
        %v1870 = vsel %vm1868, %v1869, %v1860
        %v1871 = vsel %vm1864, %v1867, %v1870
        %v1872 = vsel %vm1861, nan, %v1871
        %v1873 = vmul.f32 %v1872, %v1768
        %1874 = vst [vmem:[%s169] sm:$0x1] %v1873
        %s1875 = sand.u32 %s75, 1
        %s1876 = scalar_lea.sflag [#allocation4], %s1875
        %s1877 = sand.u32 %s75, 1
        %s1878 = scalar_lea.vmem [#allocation7], %s1877
        // Predicated region
        $region37: #{forward_batched.1} parent=27 // pred_check
          %p1879 = pneg %p85
        $region38: #{forward_batched.1} parent=27 // pred_check_branch
          %1881 = sbr.rel (%p1879) target = $region40
        $region39: #{forward_batched.1} parent=27 // pred_region
          %s1883 = ssub.s32 16, 16
          %1884 = vsyncadd %s1876, %s1883
          %s1885 = smul.addr %s20, 16
          %s1886 = scalar_lea.hbm %s2, %s1885
          %s1888 = sshll.u32 %s1878, 4
          %s1889 = int_to_ptr.vmem [resolvable:$true] %s1888
          %1891 = dma.vmem_to_hbm [thread:$0]  %s1889, 16, %s1886, %s1876
        $region40: #{forward_batched.1} parent=27 // pred_fallthru
          _
      $region28: #{forward_batched.1} parent=5 // pred_fallthru
        _
      %p1892 = scmp.le.s32.totalorder 2, %s15
      // Predicated region
      $region41: #{forward_batched.1} parent=5 // pred_check
        %p1893 = pneg %p1892
      $region42: #{forward_batched.1} parent=5 // pred_check_branch
        %1895 = sbr.rel (%p1893) target = $region44
      $region43: #{forward_batched.1} parent=5 // pred_region
        %s1896 = ssub.s32 %s15, 2
        // Predicated region
        $region45: #{forward_batched.1} parent=43 // pred_check
          %p1897 = pneg %p91
        $region46: #{forward_batched.1} parent=43 // pred_check_branch
          %1899 = sbr.rel (%p1897) target = $region48
        $region47: #{forward_batched.1} parent=43 // pred_region
          %s1900 = sand.u32 %s76, 1
          %s1901 = scalar_lea.sflag [#allocation4], %s1900
          %s1902 = sand.u32 %s76, 1
          %s1903 = scalar_lea.vmem [#allocation7], %s1902
          %1904 = dma.done %s1901, 16
        $region48: #{forward_batched.1} parent=43 // pred_fallthru
          _
      $region44: #{forward_batched.1} parent=5 // pred_fallthru
        _
    $region6: #{forward_batched.1} parent=1 // loop_footer
      %s19 = sadd.s32 1, %s15
    $region7: #{forward_batched.1} parent=1 // loop_footer_branch
      %14 = sbr.rel target = $region3
    $region8: #{forward_batched.1} parent=1 // loop_exit
      _
    %1905 = vsyncpa [#allocation3], 1
    %s1906 = scalar_lea.sflag [#allocation3], 1
    %1907 = vsyncpa %s1906, 1
    %1908 = vsyncpa [#allocation6], 1
    %1909 = vsyncpa [#allocation4], 1
    %s1910 = scalar_lea.sflag [#allocation4], 1
    %1911 = vsyncpa %s1910, 1

</llo_original>
